<compile_context>
chip_gen: v5e
topology: v5e:2x2
jax: 0.10.0
libtpu: 0.0.40
codegen_flags: <defaults>
</compile_context>

<pallas_src>
import jax
import jax.numpy as jnp
from jax import lax
from jax.experimental import pallas as pl
from jax.experimental.pallas import tpu as pltpu

OUT_LANES = 128  # lane-dense padded logits width


# --------------------------- fused forward kernel ----------------------------
def fused_kernel(x_ref, h0_ref, c0_ref, wih_ref, whh_ref, b_ref,
                 di_idx_ref, act_idx_ref,
                 w1d_ref, w1i_ref, w1a_ref, b1_ref, w2_ref, b2_ref,
                 wo_ref, bo_ref, out_ref):
    """One grid step = one independent batch.

    x_ref:        (T*2B, E)   per step t: rows [t*2B, t*2B+B) = des, [t*2B+B, (t+1)*2B) = act
    h0/c0_ref:    (2B, H)     shared across grid (constant index_map -> stays in VMEM)
    wih_ref:      (E, 4H)     whh_ref: (H, 4H)   b_ref: (1, 4H)  (b_ih+b_hh folded,
                              g-gate columns pre-scaled by 2 for the tanh-as-sigmoid trick)
    di_idx_ref:   (2B, 1)     rows 0:B = des unsort, rows B:2B = ind unsort
    act_idx_ref:  (B, 1)
    w1{d,i,a}:    (H, MLP1)   row blocks of the original (3H, MLP1) w1
    wo_ref:       (MLP2, 128) zero-padded; bo_ref: (1, 128)
    out_ref:      (B, 128)    lane-dense padded logits
    Gate order matches PyTorch: [i, f, g, o].
    """
    BB, H = h0_ref.shape              # BB = 2B (des + act stacked along batch)
    T = x_ref.shape[0] // BB
    B = BB // 2

    # ---- input projection hoisted out of the recurrence (single MXU pass) ----
    gates_in = (jnp.dot(x_ref[...], wih_ref[...], preferred_element_type=jnp.float32)
                + b_ref[...])                                        # (T*2B, 4H)

    whh = whh_ref[...]
    h = h0_ref[...]
    c = c0_ref[...]
    maxh = jnp.full((BB, H), -jnp.inf, dtype=jnp.float32)  # mirrors padding_value=-inf

    # ---- fully-unrolled T-step recurrence; carries stay in vregs ----
    # TODO(synk): explicit MXU weight staging for whh (see header note).
    for t in range(T):
        g = gates_in[t * BB:(t + 1) * BB, :] + jnp.dot(
            h, whh, preferred_element_type=jnp.float32)              # (2B, 4H)
        sg = jax.nn.sigmoid(g)            # single EUP slab pass over all four gate slots
        i_g = sg[:, 0 * H:1 * H]
        f_g = sg[:, 1 * H:2 * H]
        g_g = 2.0 * sg[:, 2 * H:3 * H] - 1.0   # tanh(x) = 2*sigmoid(2x)-1 (cols pre-scaled)
        o_g = sg[:, 3 * H:4 * H]
        c = f_g * c + i_g * g_g
        h = o_g * jnp.tanh(c)             # small (2B, H) EUP pass
        maxh = jnp.maximum(maxh, h)

    max_des = maxh[0:B, :]                # des encoder pooled output
    max_act = maxh[B:BB, :]               # act encoder pooled output

    # ---- merged des+ind batch-unsort: one (2B,B)@(B,H) one-hot matmul ----
    iota_di = lax.broadcasted_iota(jnp.int32, (BB, B), 1)
    onehot_di = (di_idx_ref[...] == iota_di).astype(jnp.float32)     # (2B, B)
    u_di = jnp.dot(onehot_di, max_des, preferred_element_type=jnp.float32)   # (2B, H)

    iota_a = lax.broadcasted_iota(jnp.int32, (B, B), 1)
    onehot_a = (act_idx_ref[...] == iota_a).astype(jnp.float32)      # (B, B)
    u_act = jnp.dot(onehot_a, max_act, preferred_element_type=jnp.float32)   # (B, H)

    # ---- MLP head: no lane concat — accumulate three row-block matmuls ----
    h1 = (jnp.dot(u_di[0:B, :], w1d_ref[...], preferred_element_type=jnp.float32)
          + jnp.dot(u_di[B:BB, :], w1i_ref[...], preferred_element_type=jnp.float32)
          + jnp.dot(u_act, w1a_ref[...], preferred_element_type=jnp.float32)
          + b1_ref[...])
    h1 = jnp.maximum(h1, 0.0)
    h2 = jnp.maximum(
        jnp.dot(h1, w2_ref[...], preferred_element_type=jnp.float32) + b2_ref[...], 0.0)
    # lane-dense padded output (first n_label lanes valid, rest zero)
    out_ref[...] = (jnp.dot(h2, wo_ref[...], preferred_element_type=jnp.float32)
                    + bo_ref[...]).astype(out_ref.dtype)


# --------------------------- one-time param transform -------------------------
def prepare_params(raw):
    """Pre-scale g-gate columns by 2, split w1 into row blocks, lane-pad the out layer."""
    H = raw["w_hh"].shape[0]
    n_label = raw["wo"].shape[1]

    def scale_g(w):  # multiply the g-gate column block [2H:3H) by 2
        return w.at[:, 2 * H:3 * H].multiply(2.0)

    w1 = raw["w1"]
    wo_pad = jnp.zeros((raw["wo"].shape[0], OUT_LANES), jnp.float32
                       ).at[:, :n_label].set(raw["wo"])
    bo_pad = jnp.zeros((1, OUT_LANES), jnp.float32).at[:, :n_label].set(raw["bo"])
    return {
        "w_ih": scale_g(raw["w_ih"]), "w_hh": scale_g(raw["w_hh"]),
        "b_lstm": scale_g(raw["b_lstm"]),
        "w1d": w1[0:H, :], "w1i": w1[H:2 * H, :], "w1a": w1[2 * H:3 * H, :],
        "b1": raw["b1"], "w2": raw["w2"], "b2": raw["b2"],
        "wo_pad": wo_pad, "bo_pad": bo_pad, "n_label": n_label,
    }


# ------------------------------ gridded wrapper --------------------------------
def text_classifier_forward_grouped(des_embed, des_unsort, ind_unsort,
                                    act_embed, act_unsort, encoder_init_hidden, p):
    """des_embed/act_embed: (G, T, B, E); *_unsort: (G, B); returns (G, B, n_label)."""
    h0, c0 = encoder_init_hidden                  # (B, H) each, shared by all groups
    G, T, B, E = des_embed.shape
    H = h0.shape[1]
    BB = 2 * B
    M1 = p["w1d"].shape[1]
    M2 = p["w2"].shape[1]
    n_label = p["n_label"]

    # Stack des + act along batch -> one recurrence over 2B rows, flatten time into rows.
    x = jnp.concatenate([des_embed, act_embed], axis=2).reshape(G, T * BB, E)
    h0_2 = jnp.concatenate([h0, h0], axis=0)      # (2B, H)
    c0_2 = jnp.concatenate([c0, c0], axis=0)
    di_idx = jnp.concatenate([des_unsort, ind_unsort], axis=1
                             ).astype(jnp.int32).reshape(G, BB, 1)
    act_idx = act_unsort.astype(jnp.int32).reshape(G, B, 1)

    inputs = (x, h0_2, c0_2, p["w_ih"], p["w_hh"], p["b_lstm"], di_idx, act_idx,
              p["w1d"], p["w1i"], p["w1a"], p["b1"], p["w2"], p["b2"],
              p["wo_pad"], p["bo_pad"])

    # Advisory cost estimate for XLA scheduling around the single custom call.
    flops = G * (2 * (T * BB) * E * 4 * H          # input projection
                 + 2 * T * BB * H * 4 * H          # recurrent matmuls
                 + 2 * BB * B * H + 2 * B * B * H  # merged one-hot unsorts
                 + 2 * B * (3 * H * M1 + M1 * M2 + M2 * OUT_LANES)  # head
                 + T * BB * 10 * H)                # gate elementwise (approx)
    transcendentals = G * T * BB * (4 * H + H)     # one sigmoid slab + tanh(c) per step
    bytes_accessed = sum(int(a.size) * a.dtype.itemsize for a in inputs) \
        + G * B * OUT_LANES * 4

    const2 = lambda g: (0, 0)                      # weights stay resident in VMEM
    grid_spec = pltpu.PrefetchScalarGridSpec(
        num_scalar_prefetch=0,
        grid=(G,),
        in_specs=[
            pl.BlockSpec((None, T * BB, E), lambda g: (g, 0, 0)),   # x (streamed)
            pl.BlockSpec((BB, H), const2),                          # h0
            pl.BlockSpec((BB, H), const2),                          # c0
            pl.BlockSpec((E, 4 * H), const2),                       # w_ih
            pl.BlockSpec((H, 4 * H), const2),                       # w_hh
            pl.BlockSpec((1, 4 * H), const2),                       # b_lstm
            pl.BlockSpec((None, BB, 1), lambda g: (g, 0, 0)),       # di_idx (streamed)
            pl.BlockSpec((None, B, 1), lambda g: (g, 0, 0)),        # act_idx (streamed)
            pl.BlockSpec((H, M1), const2),                          # w1d
            pl.BlockSpec((H, M1), const2),                          # w1i
            pl.BlockSpec((H, M1), const2),                          # w1a
            pl.BlockSpec((1, M1), const2),                          # b1
            pl.BlockSpec((M1, M2), const2),                         # w2
            pl.BlockSpec((1, M2), const2),                          # b2
            pl.BlockSpec((M2, OUT_LANES), const2),                  # wo (lane-padded)
            pl.BlockSpec((1, OUT_LANES), const2),                   # bo (lane-padded)
        ],
        out_specs=pl.BlockSpec((None, B, OUT_LANES), lambda g: (g, 0, 0)),
    )

    out = pl.pallas_call(
        fused_kernel,
        out_shape=jax.ShapeDtypeStruct((G, B, OUT_LANES), jnp.float32),
        grid_spec=grid_spec,
        compiler_params=pltpu.CompilerParams(
            dimension_semantics=("parallel",)),     # engages 2nd TC on v7x
        cost_estimate=pl.CostEstimate(flops=int(flops),
                                      transcendentals=int(transcendentals),
                                      bytes_accessed=int(bytes_accessed)),
    )(*inputs)
    return out[:, :, :n_label]


# --------------------- original-signature single-batch wrapper -----------------
def text_classifier_forward(des_embed, des_unsort, ind_embed, ind_unsort,
                            act_embed, act_unsort, encoder_init_hidden, prepped):
    del ind_embed  # dead in the reference forward (it reuses des_embed for "ind")
    out = text_classifier_forward_grouped(
        des_embed[None], des_unsort[None], ind_unsort[None],
        act_embed[None], act_unsort[None], encoder_init_hidden, prepped)
    return out[0]


# --------------------------- pure-JAX reference (parity) -----------------------
def reference_forward(des_embed, des_unsort, ind_unsort, act_embed, h0, c0, raw):
    H = h0.shape[1]
    HI = lax.Precision.HIGHEST

    def lstm(x_seq, h, c):
        outs = []
        for t in range(x_seq.shape[0]):
            g = (jnp.dot(x_seq[t], raw["w_ih"], precision=HI)
                 + jnp.dot(h, raw["w_hh"], precision=HI) + raw["b_lstm"])
            i = jax.nn.sigmoid(g[:, 0 * H:1 * H])
            f = jax.nn.sigmoid(g[:, 1 * H:2 * H])
            gg = jnp.tanh(g[:, 2 * H:3 * H])
            o = jax.nn.sigmoid(g[:, 3 * H:4 * H])
            c = f * c + i * gg
            h = o * jnp.tanh(c)
            outs.append(h)
        return jnp.stack(outs)                     # (T, B, H)

    des_out = lstm(des_embed, h0, c0)
    act_out = lstm(act_embed, h0, c0)
    des_max = des_out[:, des_unsort, :].max(axis=0)
    ind_max = des_out[:, ind_unsort, :].max(axis=0)   # reference reuses des encoder output
    act_max = act_out[:, act_unsort, :].max(axis=0)
    feat = jnp.concatenate([des_max, ind_max, act_max], axis=1)
    h1 = jnp.maximum(jnp.dot(feat, raw["w1"], precision=HI) + raw["b1"], 0.0)
    h2 = jnp.maximum(jnp.dot(h1, raw["w2"], precision=HI) + raw["b2"], 0.0)
    return jnp.dot(h2, raw["wo"], precision=HI) + raw["bo"]


# --------------------------------- main --------------------------------------
if __name__ == "__main__":
    T, B = 8, 4
    E = 32            # embedding_size
    H = 32            # hidden_size (bidirectional=False)
    MLP1, MLP2 = 64, 32
    N_LABEL = 4
    FEAT = 3 * H

    key = jax.random.PRNGKey(0)
    keys = jax.random.split(key, 16)

    def init(k, shape, scale=0.1):
        return (scale * jax.random.normal(k, shape)).astype(jnp.float32)

    raw_params = {
        # LSTM (PyTorch stores (4H,E)/(4H,H); transposed layout kept; b = b_ih + b_hh)
        "w_ih": init(keys[0], (E, 4 * H)),
        "w_hh": init(keys[1], (H, 4 * H)),
        "b_lstm": init(keys[2], (1, 4 * H)),
        # MLP head
        "w1": init(keys[3], (FEAT, MLP1)),
        "b1": init(keys[4], (1, MLP1)),
        "w2": init(keys[5], (MLP1, MLP2)),
        "b2": init(keys[6], (1, MLP2)),
        "wo": init(keys[7], (MLP2, N_LABEL)),
        "bo": init(keys[8], (1, N_LABEL)),
    }
    prepped = prepare_params(raw_params)          # one-time param transform

    des_embed = init(keys[9], (T, B, E), scale=1.0)
    act_embed = init(keys[10], (T, B, E), scale=1.0)
    ind_embed = des_embed                          # unused by the reference forward

    des_unsort = jnp.array([1, 0, 3, 2], dtype=jnp.int32)
    ind_unsort = jnp.array([2, 3, 0, 1], dtype=jnp.int32)
    act_unsort = jnp.array([0, 1, 2, 3], dtype=jnp.int32)

    h0 = jnp.zeros((B, H), dtype=jnp.float32)
    c0 = jnp.zeros((B, H), dtype=jnp.float32)

    # --- single batch (original module signature) ---
    logits = text_classifier_forward(des_embed, des_unsort, ind_embed, ind_unsort,
                                     act_embed, act_unsort, (h0, c0), prepped)
    jax.block_until_ready(logits)
    assert logits.shape == (B, N_LABEL)

    # parity against pure-JAX reference (checks gate order, tanh-as-sigmoid, unsorts, head)
    ref = reference_forward(des_embed, des_unsort, ind_unsort, act_embed, h0, c0, raw_params)
    err = float(jnp.max(jnp.abs(logits - ref)))
    assert err < 5e-3, f"parity mismatch vs reference: {err}"

    # --- gridded path: G=2 independent batches, weights resident across grid steps ---
    G = 2
    des_g = jnp.stack([des_embed, init(keys[11], (T, B, E), scale=1.0)])
    act_g = jnp.stack([act_embed, init(keys[12], (T, B, E), scale=1.0)])
    des_u_g = jnp.stack([des_unsort, jnp.array([3, 2, 1, 0], jnp.int32)])
    ind_u_g = jnp.stack([ind_unsort, jnp.array([0, 2, 1, 3], jnp.int32)])
    act_u_g = jnp.stack([act_unsort, jnp.array([1, 3, 0, 2], jnp.int32)])
    logits_g = text_classifier_forward_grouped(des_g, des_u_g, ind_u_g,
                                               act_g, act_u_g, (h0, c0), prepped)
    jax.block_until_ready(logits_g)
    assert logits_g.shape == (G, B, N_LABEL)
    assert float(jnp.max(jnp.abs(logits_g[0] - logits))) < 1e-5  # grid step 0 == single call

    print("KERNEL_OK")
</pallas_src>

<mosaic_0001>
module attributes {stable_mosaic.version = 11 : i64} {
  func.func @fused_kernel(%arg0: i32, %arg1: memref<1x64x32xf32, #tpu.memory_space<vmem>>, %arg2: memref<8x32xf32, #tpu.memory_space<vmem>>, %arg3: memref<8x32xf32, #tpu.memory_space<vmem>>, %arg4: memref<32x128xf32, #tpu.memory_space<vmem>>, %arg5: memref<32x128xf32, #tpu.memory_space<vmem>>, %arg6: memref<1x128xf32, #tpu.memory_space<vmem>>, %arg7: memref<1x8x1xi32, #tpu.memory_space<vmem>>, %arg8: memref<1x4x1xi32, #tpu.memory_space<vmem>>, %arg9: memref<32x64xf32, #tpu.memory_space<vmem>>, %arg10: memref<32x64xf32, #tpu.memory_space<vmem>>, %arg11: memref<32x64xf32, #tpu.memory_space<vmem>>, %arg12: memref<1x64xf32, #tpu.memory_space<vmem>>, %arg13: memref<64x32xf32, #tpu.memory_space<vmem>>, %arg14: memref<1x32xf32, #tpu.memory_space<vmem>>, %arg15: memref<32x128xf32, #tpu.memory_space<vmem>>, %arg16: memref<1x128xf32, #tpu.memory_space<vmem>>, %arg17: memref<1x4x128xf32, #tpu.memory_space<vmem>>) attributes {dimension_semantics = [#tpu.dimension_semantics<parallel>], iteration_bounds = array<i64: 1>, scalar_prefetch = 0 : i64, scratch_operands = 0 : i64, tpu.core_type = #tpu.core_type<tc>, window_params = [{transform_indices = @transform_0, window_bounds = array<i64: 1, 64, 32>}, {pipeline_mode = #tpu.pipeline_mode<synchronous>, transform_indices = @transform_1, window_bounds = array<i64: 8, 32>}, {pipeline_mode = #tpu.pipeline_mode<synchronous>, transform_indices = @transform_2, window_bounds = array<i64: 8, 32>}, {pipeline_mode = #tpu.pipeline_mode<synchronous>, transform_indices = @transform_3, window_bounds = array<i64: 32, 128>}, {pipeline_mode = #tpu.pipeline_mode<synchronous>, transform_indices = @transform_4, window_bounds = array<i64: 32, 128>}, {pipeline_mode = #tpu.pipeline_mode<synchronous>, transform_indices = @transform_5, window_bounds = array<i64: 1, 128>}, {transform_indices = @transform_6, window_bounds = array<i64: 1, 8, 1>}, {transform_indices = @transform_7, window_bounds = array<i64: 1, 4, 1>}, {pipeline_mode = #tpu.pipeline_mode<synchronous>, transform_indices = @transform_8, window_bounds = array<i64: 32, 64>}, {pipeline_mode = #tpu.pipeline_mode<synchronous>, transform_indices = @transform_9, window_bounds = array<i64: 32, 64>}, {pipeline_mode = #tpu.pipeline_mode<synchronous>, transform_indices = @transform_10, window_bounds = array<i64: 32, 64>}, {pipeline_mode = #tpu.pipeline_mode<synchronous>, transform_indices = @transform_11, window_bounds = array<i64: 1, 64>}, {pipeline_mode = #tpu.pipeline_mode<synchronous>, transform_indices = @transform_12, window_bounds = array<i64: 64, 32>}, {pipeline_mode = #tpu.pipeline_mode<synchronous>, transform_indices = @transform_13, window_bounds = array<i64: 1, 32>}, {pipeline_mode = #tpu.pipeline_mode<synchronous>, transform_indices = @transform_14, window_bounds = array<i64: 32, 128>}, {pipeline_mode = #tpu.pipeline_mode<synchronous>, transform_indices = @transform_15, window_bounds = array<i64: 1, 128>}, {transform_indices = @transform_16, window_bounds = array<i64: 1, 4, 128>}]} {
    %c0 = arith.constant 0 : index
    %c0_0 = arith.constant 0 : index
    %c0_1 = arith.constant 0 : index
    %0 = vector.load %arg1[%c0, %c0_0, %c0_1] : memref<1x64x32xf32, #tpu.memory_space<vmem>>, vector<1x64x32xf32>
    %1 = vector.shape_cast %0 : vector<1x64x32xf32> to vector<64x32xf32>
    %c0_2 = arith.constant 0 : index
    %c0_3 = arith.constant 0 : index
    %2 = vector.load %arg4[%c0_2, %c0_3] : memref<32x128xf32, #tpu.memory_space<vmem>>, vector<32x128xf32>
    %cst = arith.constant dense<0.000000e+00> : vector<64x128xf32>
    %3 = tpu.matmul %1, %2, %cst {dimension_numbers = #tpu.dot_dimension_numbers<[1], [0], [0], [1], [0, 0, 1, 1], [], []>} : vector<64x32xf32>, vector<32x128xf32>, vector<64x128xf32> -> vector<64x128xf32>
    %c0_4 = arith.constant 0 : index
    %c0_5 = arith.constant 0 : index
    %4 = vector.load %arg6[%c0_4, %c0_5] : memref<1x128xf32, #tpu.memory_space<vmem>>, vector<1x128xf32>
    %5 = vector.broadcast %4 : vector<1x128xf32> to vector<64x128xf32>
    %6 = arith.addf %3, %5 : vector<64x128xf32>
    %c0_6 = arith.constant 0 : index
    %c0_7 = arith.constant 0 : index
    %7 = vector.load %arg5[%c0_6, %c0_7] : memref<32x128xf32, #tpu.memory_space<vmem>>, vector<32x128xf32>
    %c0_8 = arith.constant 0 : index
    %c0_9 = arith.constant 0 : index
    %8 = vector.load %arg2[%c0_8, %c0_9] : memref<8x32xf32, #tpu.memory_space<vmem>>, vector<8x32xf32>
    %c0_10 = arith.constant 0 : index
    %c0_11 = arith.constant 0 : index
    %9 = vector.load %arg3[%c0_10, %c0_11] : memref<8x32xf32, #tpu.memory_space<vmem>>, vector<8x32xf32>
    %cst_12 = arith.constant 0xFF800000 : f32
    %10 = vector.broadcast %cst_12 : f32 to vector<8x32xf32>
    %11 = vector.extract_strided_slice %6 {offsets = [0, 0], sizes = [8, 128], strides = [1, 1]} : vector<64x128xf32> to vector<8x128xf32>
    %cst_13 = arith.constant dense<0.000000e+00> : vector<8x128xf32>
    %12 = tpu.matmul %8, %7, %cst_13 {dimension_numbers = #tpu.dot_dimension_numbers<[1], [0], [0], [1], [0, 0, 1, 1], [], []>} : vector<8x32xf32>, vector<32x128xf32>, vector<8x128xf32> -> vector<8x128xf32>
    %13 = arith.addf %11, %12 : vector<8x128xf32>
    %14 = arith.negf %13 : vector<8x128xf32>
    %15 = math.exp %14 : vector<8x128xf32>
    %cst_14 = arith.constant 1.000000e+00 : f32
    %16 = vector.broadcast %cst_14 : f32 to vector<8x128xf32>
    %17 = arith.addf %16, %15 : vector<8x128xf32>
    %18 = arith.divf %16, %17 : vector<8x128xf32>
    %19 = vector.extract_strided_slice %18 {offsets = [0, 0], sizes = [8, 32], strides = [1, 1]} : vector<8x128xf32> to vector<8x32xf32>
    %20 = vector.extract_strided_slice %18 {offsets = [0, 32], sizes = [8, 32], strides = [1, 1]} : vector<8x128xf32> to vector<8x32xf32>
    %21 = vector.extract_strided_slice %18 {offsets = [0, 64], sizes = [8, 32], strides = [1, 1]} : vector<8x128xf32> to vector<8x32xf32>
    %cst_15 = arith.constant 2.000000e+00 : f32
    %22 = vector.broadcast %cst_15 : f32 to vector<8x32xf32>
    %23 = arith.mulf %22, %21 : vector<8x32xf32>
    %cst_16 = arith.constant 1.000000e+00 : f32
    %24 = vector.broadcast %cst_16 : f32 to vector<8x32xf32>
    %25 = arith.subf %23, %24 : vector<8x32xf32>
    %26 = vector.extract_strided_slice %18 {offsets = [0, 96], sizes = [8, 32], strides = [1, 1]} : vector<8x128xf32> to vector<8x32xf32>
    %27 = arith.mulf %20, %9 : vector<8x32xf32>
    %28 = arith.mulf %19, %25 : vector<8x32xf32>
    %29 = arith.addf %27, %28 : vector<8x32xf32>
    %30 = math.tanh %29 : vector<8x32xf32>
    %31 = arith.mulf %26, %30 : vector<8x32xf32>
    %32 = arith.maximumf %10, %31 : vector<8x32xf32>
    %33 = vector.extract_strided_slice %6 {offsets = [8, 0], sizes = [8, 128], strides = [1, 1]} : vector<64x128xf32> to vector<8x128xf32>
    %cst_17 = arith.constant dense<0.000000e+00> : vector<8x128xf32>
    %34 = tpu.matmul %31, %7, %cst_17 {dimension_numbers = #tpu.dot_dimension_numbers<[1], [0], [0], [1], [0, 0, 1, 1], [], []>} : vector<8x32xf32>, vector<32x128xf32>, vector<8x128xf32> -> vector<8x128xf32>
    %35 = arith.addf %33, %34 : vector<8x128xf32>
    %36 = arith.negf %35 : vector<8x128xf32>
    %37 = math.exp %36 : vector<8x128xf32>
    %cst_18 = arith.constant 1.000000e+00 : f32
    %38 = vector.broadcast %cst_18 : f32 to vector<8x128xf32>
    %39 = arith.addf %38, %37 : vector<8x128xf32>
    %40 = arith.divf %38, %39 : vector<8x128xf32>
    %41 = vector.extract_strided_slice %40 {offsets = [0, 0], sizes = [8, 32], strides = [1, 1]} : vector<8x128xf32> to vector<8x32xf32>
    %42 = vector.extract_strided_slice %40 {offsets = [0, 32], sizes = [8, 32], strides = [1, 1]} : vector<8x128xf32> to vector<8x32xf32>
    %43 = vector.extract_strided_slice %40 {offsets = [0, 64], sizes = [8, 32], strides = [1, 1]} : vector<8x128xf32> to vector<8x32xf32>
    %cst_19 = arith.constant 2.000000e+00 : f32
    %44 = vector.broadcast %cst_19 : f32 to vector<8x32xf32>
    %45 = arith.mulf %44, %43 : vector<8x32xf32>
    %cst_20 = arith.constant 1.000000e+00 : f32
    %46 = vector.broadcast %cst_20 : f32 to vector<8x32xf32>
    %47 = arith.subf %45, %46 : vector<8x32xf32>
    %48 = vector.extract_strided_slice %40 {offsets = [0, 96], sizes = [8, 32], strides = [1, 1]} : vector<8x128xf32> to vector<8x32xf32>
    %49 = arith.mulf %42, %29 : vector<8x32xf32>
    %50 = arith.mulf %41, %47 : vector<8x32xf32>
    %51 = arith.addf %49, %50 : vector<8x32xf32>
    %52 = math.tanh %51 : vector<8x32xf32>
    %53 = arith.mulf %48, %52 : vector<8x32xf32>
    %54 = arith.maximumf %32, %53 : vector<8x32xf32>
    %55 = vector.extract_strided_slice %6 {offsets = [16, 0], sizes = [8, 128], strides = [1, 1]} : vector<64x128xf32> to vector<8x128xf32>
    %cst_21 = arith.constant dense<0.000000e+00> : vector<8x128xf32>
    %56 = tpu.matmul %53, %7, %cst_21 {dimension_numbers = #tpu.dot_dimension_numbers<[1], [0], [0], [1], [0, 0, 1, 1], [], []>} : vector<8x32xf32>, vector<32x128xf32>, vector<8x128xf32> -> vector<8x128xf32>
    %57 = arith.addf %55, %56 : vector<8x128xf32>
    %58 = arith.negf %57 : vector<8x128xf32>
    %59 = math.exp %58 : vector<8x128xf32>
    %cst_22 = arith.constant 1.000000e+00 : f32
    %60 = vector.broadcast %cst_22 : f32 to vector<8x128xf32>
    %61 = arith.addf %60, %59 : vector<8x128xf32>
    %62 = arith.divf %60, %61 : vector<8x128xf32>
    %63 = vector.extract_strided_slice %62 {offsets = [0, 0], sizes = [8, 32], strides = [1, 1]} : vector<8x128xf32> to vector<8x32xf32>
    %64 = vector.extract_strided_slice %62 {offsets = [0, 32], sizes = [8, 32], strides = [1, 1]} : vector<8x128xf32> to vector<8x32xf32>
    %65 = vector.extract_strided_slice %62 {offsets = [0, 64], sizes = [8, 32], strides = [1, 1]} : vector<8x128xf32> to vector<8x32xf32>
    %cst_23 = arith.constant 2.000000e+00 : f32
    %66 = vector.broadcast %cst_23 : f32 to vector<8x32xf32>
    %67 = arith.mulf %66, %65 : vector<8x32xf32>
    %cst_24 = arith.constant 1.000000e+00 : f32
    %68 = vector.broadcast %cst_24 : f32 to vector<8x32xf32>
    %69 = arith.subf %67, %68 : vector<8x32xf32>
    %70 = vector.extract_strided_slice %62 {offsets = [0, 96], sizes = [8, 32], strides = [1, 1]} : vector<8x128xf32> to vector<8x32xf32>
    %71 = arith.mulf %64, %51 : vector<8x32xf32>
    %72 = arith.mulf %63, %69 : vector<8x32xf32>
    %73 = arith.addf %71, %72 : vector<8x32xf32>
    %74 = math.tanh %73 : vector<8x32xf32>
    %75 = arith.mulf %70, %74 : vector<8x32xf32>
    %76 = arith.maximumf %54, %75 : vector<8x32xf32>
    %77 = vector.extract_strided_slice %6 {offsets = [24, 0], sizes = [8, 128], strides = [1, 1]} : vector<64x128xf32> to vector<8x128xf32>
    %cst_25 = arith.constant dense<0.000000e+00> : vector<8x128xf32>
    %78 = tpu.matmul %75, %7, %cst_25 {dimension_numbers = #tpu.dot_dimension_numbers<[1], [0], [0], [1], [0, 0, 1, 1], [], []>} : vector<8x32xf32>, vector<32x128xf32>, vector<8x128xf32> -> vector<8x128xf32>
    %79 = arith.addf %77, %78 : vector<8x128xf32>
    %80 = arith.negf %79 : vector<8x128xf32>
    %81 = math.exp %80 : vector<8x128xf32>
    %cst_26 = arith.constant 1.000000e+00 : f32
    %82 = vector.broadcast %cst_26 : f32 to vector<8x128xf32>
    %83 = arith.addf %82, %81 : vector<8x128xf32>
    %84 = arith.divf %82, %83 : vector<8x128xf32>
    %85 = vector.extract_strided_slice %84 {offsets = [0, 0], sizes = [8, 32], strides = [1, 1]} : vector<8x128xf32> to vector<8x32xf32>
    %86 = vector.extract_strided_slice %84 {offsets = [0, 32], sizes = [8, 32], strides = [1, 1]} : vector<8x128xf32> to vector<8x32xf32>
    %87 = vector.extract_strided_slice %84 {offsets = [0, 64], sizes = [8, 32], strides = [1, 1]} : vector<8x128xf32> to vector<8x32xf32>
    %cst_27 = arith.constant 2.000000e+00 : f32
    %88 = vector.broadcast %cst_27 : f32 to vector<8x32xf32>
    %89 = arith.mulf %88, %87 : vector<8x32xf32>
    %cst_28 = arith.constant 1.000000e+00 : f32
    %90 = vector.broadcast %cst_28 : f32 to vector<8x32xf32>
    %91 = arith.subf %89, %90 : vector<8x32xf32>
    %92 = vector.extract_strided_slice %84 {offsets = [0, 96], sizes = [8, 32], strides = [1, 1]} : vector<8x128xf32> to vector<8x32xf32>
    %93 = arith.mulf %86, %73 : vector<8x32xf32>
    %94 = arith.mulf %85, %91 : vector<8x32xf32>
    %95 = arith.addf %93, %94 : vector<8x32xf32>
    %96 = math.tanh %95 : vector<8x32xf32>
    %97 = arith.mulf %92, %96 : vector<8x32xf32>
    %98 = arith.maximumf %76, %97 : vector<8x32xf32>
    %99 = vector.extract_strided_slice %6 {offsets = [32, 0], sizes = [8, 128], strides = [1, 1]} : vector<64x128xf32> to vector<8x128xf32>
    %cst_29 = arith.constant dense<0.000000e+00> : vector<8x128xf32>
    %100 = tpu.matmul %97, %7, %cst_29 {dimension_numbers = #tpu.dot_dimension_numbers<[1], [0], [0], [1], [0, 0, 1, 1], [], []>} : vector<8x32xf32>, vector<32x128xf32>, vector<8x128xf32> -> vector<8x128xf32>
    %101 = arith.addf %99, %100 : vector<8x128xf32>
    %102 = arith.negf %101 : vector<8x128xf32>
    %103 = math.exp %102 : vector<8x128xf32>
    %cst_30 = arith.constant 1.000000e+00 : f32
    %104 = vector.broadcast %cst_30 : f32 to vector<8x128xf32>
    %105 = arith.addf %104, %103 : vector<8x128xf32>
    %106 = arith.divf %104, %105 : vector<8x128xf32>
    %107 = vector.extract_strided_slice %106 {offsets = [0, 0], sizes = [8, 32], strides = [1, 1]} : vector<8x128xf32> to vector<8x32xf32>
    %108 = vector.extract_strided_slice %106 {offsets = [0, 32], sizes = [8, 32], strides = [1, 1]} : vector<8x128xf32> to vector<8x32xf32>
    %109 = vector.extract_strided_slice %106 {offsets = [0, 64], sizes = [8, 32], strides = [1, 1]} : vector<8x128xf32> to vector<8x32xf32>
    %cst_31 = arith.constant 2.000000e+00 : f32
    %110 = vector.broadcast %cst_31 : f32 to vector<8x32xf32>
    %111 = arith.mulf %110, %109 : vector<8x32xf32>
    %cst_32 = arith.constant 1.000000e+00 : f32
    %112 = vector.broadcast %cst_32 : f32 to vector<8x32xf32>
    %113 = arith.subf %111, %112 : vector<8x32xf32>
    %114 = vector.extract_strided_slice %106 {offsets = [0, 96], sizes = [8, 32], strides = [1, 1]} : vector<8x128xf32> to vector<8x32xf32>
    %115 = arith.mulf %108, %95 : vector<8x32xf32>
    %116 = arith.mulf %107, %113 : vector<8x32xf32>
    %117 = arith.addf %115, %116 : vector<8x32xf32>
    %118 = math.tanh %117 : vector<8x32xf32>
    %119 = arith.mulf %114, %118 : vector<8x32xf32>
    %120 = arith.maximumf %98, %119 : vector<8x32xf32>
    %121 = vector.extract_strided_slice %6 {offsets = [40, 0], sizes = [8, 128], strides = [1, 1]} : vector<64x128xf32> to vector<8x128xf32>
    %cst_33 = arith.constant dense<0.000000e+00> : vector<8x128xf32>
    %122 = tpu.matmul %119, %7, %cst_33 {dimension_numbers = #tpu.dot_dimension_numbers<[1], [0], [0], [1], [0, 0, 1, 1], [], []>} : vector<8x32xf32>, vector<32x128xf32>, vector<8x128xf32> -> vector<8x128xf32>
    %123 = arith.addf %121, %122 : vector<8x128xf32>
    %124 = arith.negf %123 : vector<8x128xf32>
    %125 = math.exp %124 : vector<8x128xf32>
    %cst_34 = arith.constant 1.000000e+00 : f32
    %126 = vector.broadcast %cst_34 : f32 to vector<8x128xf32>
    %127 = arith.addf %126, %125 : vector<8x128xf32>
    %128 = arith.divf %126, %127 : vector<8x128xf32>
    %129 = vector.extract_strided_slice %128 {offsets = [0, 0], sizes = [8, 32], strides = [1, 1]} : vector<8x128xf32> to vector<8x32xf32>
    %130 = vector.extract_strided_slice %128 {offsets = [0, 32], sizes = [8, 32], strides = [1, 1]} : vector<8x128xf32> to vector<8x32xf32>
    %131 = vector.extract_strided_slice %128 {offsets = [0, 64], sizes = [8, 32], strides = [1, 1]} : vector<8x128xf32> to vector<8x32xf32>
    %cst_35 = arith.constant 2.000000e+00 : f32
    %132 = vector.broadcast %cst_35 : f32 to vector<8x32xf32>
    %133 = arith.mulf %132, %131 : vector<8x32xf32>
    %cst_36 = arith.constant 1.000000e+00 : f32
    %134 = vector.broadcast %cst_36 : f32 to vector<8x32xf32>
    %135 = arith.subf %133, %134 : vector<8x32xf32>
    %136 = vector.extract_strided_slice %128 {offsets = [0, 96], sizes = [8, 32], strides = [1, 1]} : vector<8x128xf32> to vector<8x32xf32>
    %137 = arith.mulf %130, %117 : vector<8x32xf32>
    %138 = arith.mulf %129, %135 : vector<8x32xf32>
    %139 = arith.addf %137, %138 : vector<8x32xf32>
    %140 = math.tanh %139 : vector<8x32xf32>
    %141 = arith.mulf %136, %140 : vector<8x32xf32>
    %142 = arith.maximumf %120, %141 : vector<8x32xf32>
    %143 = vector.extract_strided_slice %6 {offsets = [48, 0], sizes = [8, 128], strides = [1, 1]} : vector<64x128xf32> to vector<8x128xf32>
    %cst_37 = arith.constant dense<0.000000e+00> : vector<8x128xf32>
    %144 = tpu.matmul %141, %7, %cst_37 {dimension_numbers = #tpu.dot_dimension_numbers<[1], [0], [0], [1], [0, 0, 1, 1], [], []>} : vector<8x32xf32>, vector<32x128xf32>, vector<8x128xf32> -> vector<8x128xf32>
    %145 = arith.addf %143, %144 : vector<8x128xf32>
    %146 = arith.negf %145 : vector<8x128xf32>
    %147 = math.exp %146 : vector<8x128xf32>
    %cst_38 = arith.constant 1.000000e+00 : f32
    %148 = vector.broadcast %cst_38 : f32 to vector<8x128xf32>
    %149 = arith.addf %148, %147 : vector<8x128xf32>
    %150 = arith.divf %148, %149 : vector<8x128xf32>
    %151 = vector.extract_strided_slice %150 {offsets = [0, 0], sizes = [8, 32], strides = [1, 1]} : vector<8x128xf32> to vector<8x32xf32>
    %152 = vector.extract_strided_slice %150 {offsets = [0, 32], sizes = [8, 32], strides = [1, 1]} : vector<8x128xf32> to vector<8x32xf32>
    %153 = vector.extract_strided_slice %150 {offsets = [0, 64], sizes = [8, 32], strides = [1, 1]} : vector<8x128xf32> to vector<8x32xf32>
    %cst_39 = arith.constant 2.000000e+00 : f32
    %154 = vector.broadcast %cst_39 : f32 to vector<8x32xf32>
    %155 = arith.mulf %154, %153 : vector<8x32xf32>
    %cst_40 = arith.constant 1.000000e+00 : f32
    %156 = vector.broadcast %cst_40 : f32 to vector<8x32xf32>
    %157 = arith.subf %155, %156 : vector<8x32xf32>
    %158 = vector.extract_strided_slice %150 {offsets = [0, 96], sizes = [8, 32], strides = [1, 1]} : vector<8x128xf32> to vector<8x32xf32>
    %159 = arith.mulf %152, %139 : vector<8x32xf32>
    %160 = arith.mulf %151, %157 : vector<8x32xf32>
    %161 = arith.addf %159, %160 : vector<8x32xf32>
    %162 = math.tanh %161 : vector<8x32xf32>
    %163 = arith.mulf %158, %162 : vector<8x32xf32>
    %164 = arith.maximumf %142, %163 : vector<8x32xf32>
    %165 = vector.extract_strided_slice %6 {offsets = [56, 0], sizes = [8, 128], strides = [1, 1]} : vector<64x128xf32> to vector<8x128xf32>
    %cst_41 = arith.constant dense<0.000000e+00> : vector<8x128xf32>
    %166 = tpu.matmul %163, %7, %cst_41 {dimension_numbers = #tpu.dot_dimension_numbers<[1], [0], [0], [1], [0, 0, 1, 1], [], []>} : vector<8x32xf32>, vector<32x128xf32>, vector<8x128xf32> -> vector<8x128xf32>
    %167 = arith.addf %165, %166 : vector<8x128xf32>
    %168 = arith.negf %167 : vector<8x128xf32>
    %169 = math.exp %168 : vector<8x128xf32>
    %cst_42 = arith.constant 1.000000e+00 : f32
    %170 = vector.broadcast %cst_42 : f32 to vector<8x128xf32>
    %171 = arith.addf %170, %169 : vector<8x128xf32>
    %172 = arith.divf %170, %171 : vector<8x128xf32>
    %173 = vector.extract_strided_slice %172 {offsets = [0, 0], sizes = [8, 32], strides = [1, 1]} : vector<8x128xf32> to vector<8x32xf32>
    %174 = vector.extract_strided_slice %172 {offsets = [0, 32], sizes = [8, 32], strides = [1, 1]} : vector<8x128xf32> to vector<8x32xf32>
    %175 = vector.extract_strided_slice %172 {offsets = [0, 64], sizes = [8, 32], strides = [1, 1]} : vector<8x128xf32> to vector<8x32xf32>
    %cst_43 = arith.constant 2.000000e+00 : f32
    %176 = vector.broadcast %cst_43 : f32 to vector<8x32xf32>
    %177 = arith.mulf %176, %175 : vector<8x32xf32>
    %cst_44 = arith.constant 1.000000e+00 : f32
    %178 = vector.broadcast %cst_44 : f32 to vector<8x32xf32>
    %179 = arith.subf %177, %178 : vector<8x32xf32>
    %180 = vector.extract_strided_slice %172 {offsets = [0, 96], sizes = [8, 32], strides = [1, 1]} : vector<8x128xf32> to vector<8x32xf32>
    %181 = arith.mulf %174, %161 : vector<8x32xf32>
    %182 = arith.mulf %173, %179 : vector<8x32xf32>
    %183 = arith.addf %181, %182 : vector<8x32xf32>
    %184 = math.tanh %183 : vector<8x32xf32>
    %185 = arith.mulf %180, %184 : vector<8x32xf32>
    %186 = arith.maximumf %164, %185 : vector<8x32xf32>
    %187 = vector.extract_strided_slice %186 {offsets = [0, 0], sizes = [4, 32], strides = [1, 1]} : vector<8x32xf32> to vector<4x32xf32>
    %188 = vector.extract_strided_slice %186 {offsets = [4, 0], sizes = [4, 32], strides = [1, 1]} : vector<8x32xf32> to vector<4x32xf32>
    %189 = tpu.iota {dimensions = array<i32: 1>} : vector<8x4xi32>
    %c0_45 = arith.constant 0 : index
    %c0_46 = arith.constant 0 : index
    %c0_47 = arith.constant 0 : index
    %190 = vector.load %arg7[%c0_45, %c0_46, %c0_47] : memref<1x8x1xi32, #tpu.memory_space<vmem>>, vector<1x8x1xi32>
    %191 = vector.shape_cast %190 : vector<1x8x1xi32> to vector<8x1xi32>
    %192 = vector.broadcast %191 : vector<8x1xi32> to vector<8x4xi32>
    %193 = arith.cmpi eq, %192, %189 : vector<8x4xi32>
    %194 = arith.extui %193 : vector<8x4xi1> to vector<8x4xi32>
    %195 = arith.sitofp %194 : vector<8x4xi32> to vector<8x4xf32>
    %cst_48 = arith.constant dense<0.000000e+00> : vector<8x32xf32>
    %196 = tpu.matmul %195, %187, %cst_48 {dimension_numbers = #tpu.dot_dimension_numbers<[1], [0], [0], [1], [0, 0, 1, 1], [], []>} : vector<8x4xf32>, vector<4x32xf32>, vector<8x32xf32> -> vector<8x32xf32>
    %197 = tpu.iota {dimensions = array<i32: 1>} : vector<4x4xi32>
    %c0_49 = arith.constant 0 : index
    %c0_50 = arith.constant 0 : index
    %c0_51 = arith.constant 0 : index
    %198 = vector.load %arg8[%c0_49, %c0_50, %c0_51] : memref<1x4x1xi32, #tpu.memory_space<vmem>>, vector<1x4x1xi32>
    %199 = vector.shape_cast %198 : vector<1x4x1xi32> to vector<4x1xi32>
    %200 = vector.broadcast %199 : vector<4x1xi32> to vector<4x4xi32>
    %201 = arith.cmpi eq, %200, %197 : vector<4x4xi32>
    %202 = arith.extui %201 : vector<4x4xi1> to vector<4x4xi32>
    %203 = arith.sitofp %202 : vector<4x4xi32> to vector<4x4xf32>
    %cst_52 = arith.constant dense<0.000000e+00> : vector<4x32xf32>
    %204 = tpu.matmul %203, %188, %cst_52 {dimension_numbers = #tpu.dot_dimension_numbers<[1], [0], [0], [1], [0, 0, 1, 1], [], []>} : vector<4x4xf32>, vector<4x32xf32>, vector<4x32xf32> -> vector<4x32xf32>
    %205 = vector.extract_strided_slice %196 {offsets = [0, 0], sizes = [4, 32], strides = [1, 1]} : vector<8x32xf32> to vector<4x32xf32>
    %c0_53 = arith.constant 0 : index
    %c0_54 = arith.constant 0 : index
    %206 = vector.load %arg9[%c0_53, %c0_54] : memref<32x64xf32, #tpu.memory_space<vmem>>, vector<32x64xf32>
    %cst_55 = arith.constant dense<0.000000e+00> : vector<4x64xf32>
    %207 = tpu.matmul %205, %206, %cst_55 {dimension_numbers = #tpu.dot_dimension_numbers<[1], [0], [0], [1], [0, 0, 1, 1], [], []>} : vector<4x32xf32>, vector<32x64xf32>, vector<4x64xf32> -> vector<4x64xf32>
    %208 = vector.extract_strided_slice %196 {offsets = [4, 0], sizes = [4, 32], strides = [1, 1]} : vector<8x32xf32> to vector<4x32xf32>
    %c0_56 = arith.constant 0 : index
    %c0_57 = arith.constant 0 : index
    %209 = vector.load %arg10[%c0_56, %c0_57] : memref<32x64xf32, #tpu.memory_space<vmem>>, vector<32x64xf32>
    %cst_58 = arith.constant dense<0.000000e+00> : vector<4x64xf32>
    %210 = tpu.matmul %208, %209, %cst_58 {dimension_numbers = #tpu.dot_dimension_numbers<[1], [0], [0], [1], [0, 0, 1, 1], [], []>} : vector<4x32xf32>, vector<32x64xf32>, vector<4x64xf32> -> vector<4x64xf32>
    %211 = arith.addf %207, %210 : vector<4x64xf32>
    %c0_59 = arith.constant 0 : index
    %c0_60 = arith.constant 0 : index
    %212 = vector.load %arg11[%c0_59, %c0_60] : memref<32x64xf32, #tpu.memory_space<vmem>>, vector<32x64xf32>
    %cst_61 = arith.constant dense<0.000000e+00> : vector<4x64xf32>
    %213 = tpu.matmul %204, %212, %cst_61 {dimension_numbers = #tpu.dot_dimension_numbers<[1], [0], [0], [1], [0, 0, 1, 1], [], []>} : vector<4x32xf32>, vector<32x64xf32>, vector<4x64xf32> -> vector<4x64xf32>
    %214 = arith.addf %211, %213 : vector<4x64xf32>
    %c0_62 = arith.constant 0 : index
    %c0_63 = arith.constant 0 : index
    %215 = vector.load %arg12[%c0_62, %c0_63] : memref<1x64xf32, #tpu.memory_space<vmem>>, vector<1x64xf32>
    %216 = vector.broadcast %215 : vector<1x64xf32> to vector<4x64xf32>
    %217 = arith.addf %214, %216 : vector<4x64xf32>
    %cst_64 = arith.constant 0.000000e+00 : f32
    %218 = vector.broadcast %cst_64 : f32 to vector<4x64xf32>
    %219 = arith.maximumf %217, %218 : vector<4x64xf32>
    %c0_65 = arith.constant 0 : index
    %c0_66 = arith.constant 0 : index
    %220 = vector.load %arg13[%c0_65, %c0_66] : memref<64x32xf32, #tpu.memory_space<vmem>>, vector<64x32xf32>
    %cst_67 = arith.constant dense<0.000000e+00> : vector<4x32xf32>
    %221 = tpu.matmul %219, %220, %cst_67 {dimension_numbers = #tpu.dot_dimension_numbers<[1], [0], [0], [1], [0, 0, 1, 1], [], []>} : vector<4x64xf32>, vector<64x32xf32>, vector<4x32xf32> -> vector<4x32xf32>
    %c0_68 = arith.constant 0 : index
    %c0_69 = arith.constant 0 : index
    %222 = vector.load %arg14[%c0_68, %c0_69] : memref<1x32xf32, #tpu.memory_space<vmem>>, vector<1x32xf32>
    %223 = vector.broadcast %222 : vector<1x32xf32> to vector<4x32xf32>
    %224 = arith.addf %221, %223 : vector<4x32xf32>
    %cst_70 = arith.constant 0.000000e+00 : f32
    %225 = vector.broadcast %cst_70 : f32 to vector<4x32xf32>
    %226 = arith.maximumf %224, %225 : vector<4x32xf32>
    %c0_71 = arith.constant 0 : index
    %c0_72 = arith.constant 0 : index
    %227 = vector.load %arg15[%c0_71, %c0_72] : memref<32x128xf32, #tpu.memory_space<vmem>>, vector<32x128xf32>
    %cst_73 = arith.constant dense<0.000000e+00> : vector<4x128xf32>
    %228 = tpu.matmul %226, %227, %cst_73 {dimension_numbers = #tpu.dot_dimension_numbers<[1], [0], [0], [1], [0, 0, 1, 1], [], []>} : vector<4x32xf32>, vector<32x128xf32>, vector<4x128xf32> -> vector<4x128xf32>
    %c0_74 = arith.constant 0 : index
    %c0_75 = arith.constant 0 : index
    %229 = vector.load %arg16[%c0_74, %c0_75] : memref<1x128xf32, #tpu.memory_space<vmem>>, vector<1x128xf32>
    %230 = vector.broadcast %229 : vector<1x128xf32> to vector<4x128xf32>
    %231 = arith.addf %228, %230 : vector<4x128xf32>
    %c0_76 = arith.constant 0 : index
    %c0_77 = arith.constant 0 : index
    %c0_78 = arith.constant 0 : index
    %232 = vector.load %arg17[%c0_76, %c0_77, %c0_78] : memref<1x4x128xf32, #tpu.memory_space<vmem>>, vector<1x4x128xf32>
    %233 = vector.shape_cast %232 : vector<1x4x128xf32> to vector<4x128xf32>
    %234 = vector.shape_cast %231 : vector<4x128xf32> to vector<1x4x128xf32>
    tpu.vector_store %arg17[%c0_76, %c0_77, %c0_78], %234 {strides = array<i32>} : memref<1x4x128xf32, #tpu.memory_space<vmem>>, vector<1x4x128xf32>,
    return
  }
  func.func @transform_0(%arg0: i32) -> (i32, i32, i32) {
    %c0_i32 = arith.constant 0 : i32
    %c0_i32_0 = arith.constant 0 : i32
    %c0_i32_1 = arith.constant 0 : i32
    return %arg0, %c0_i32, %c0_i32_0 : i32, i32, i32
  }
  func.func @transform_1(%arg0: i32) -> (i32, i32) {
    %c0_i32 = arith.constant 0 : i32
    %c0_i32_0 = arith.constant 0 : i32
    %c0_i32_1 = arith.constant 0 : i32
    return %c0_i32, %c0_i32_0 : i32, i32
  }
  func.func @transform_2(%arg0: i32) -> (i32, i32) {
    %c0_i32 = arith.constant 0 : i32
    %c0_i32_0 = arith.constant 0 : i32
    %c0_i32_1 = arith.constant 0 : i32
    return %c0_i32, %c0_i32_0 : i32, i32
  }
  func.func @transform_3(%arg0: i32) -> (i32, i32) {
    %c0_i32 = arith.constant 0 : i32
    %c0_i32_0 = arith.constant 0 : i32
    %c0_i32_1 = arith.constant 0 : i32
    return %c0_i32, %c0_i32_0 : i32, i32
  }
  func.func @transform_4(%arg0: i32) -> (i32, i32) {
    %c0_i32 = arith.constant 0 : i32
    %c0_i32_0 = arith.constant 0 : i32
    %c0_i32_1 = arith.constant 0 : i32
    return %c0_i32, %c0_i32_0 : i32, i32
  }
  func.func @transform_5(%arg0: i32) -> (i32, i32) {
    %c0_i32 = arith.constant 0 : i32
    %c0_i32_0 = arith.constant 0 : i32
    %c0_i32_1 = arith.constant 0 : i32
    return %c0_i32, %c0_i32_0 : i32, i32
  }
  func.func @transform_6(%arg0: i32) -> (i32, i32, i32) {
    %c0_i32 = arith.constant 0 : i32
    %c0_i32_0 = arith.constant 0 : i32
    %c0_i32_1 = arith.constant 0 : i32
    return %arg0, %c0_i32, %c0_i32_0 : i32, i32, i32
  }
  func.func @transform_7(%arg0: i32) -> (i32, i32, i32) {
    %c0_i32 = arith.constant 0 : i32
    %c0_i32_0 = arith.constant 0 : i32
    %c0_i32_1 = arith.constant 0 : i32
    return %arg0, %c0_i32, %c0_i32_0 : i32, i32, i32
  }
  func.func @transform_8(%arg0: i32) -> (i32, i32) {
    %c0_i32 = arith.constant 0 : i32
    %c0_i32_0 = arith.constant 0 : i32
    %c0_i32_1 = arith.constant 0 : i32
    return %c0_i32, %c0_i32_0 : i32, i32
  }
  func.func @transform_9(%arg0: i32) -> (i32, i32) {
    %c0_i32 = arith.constant 0 : i32
    %c0_i32_0 = arith.constant 0 : i32
    %c0_i32_1 = arith.constant 0 : i32
    return %c0_i32, %c0_i32_0 : i32, i32
  }
  func.func @transform_10(%arg0: i32) -> (i32, i32) {
    %c0_i32 = arith.constant 0 : i32
    %c0_i32_0 = arith.constant 0 : i32
    %c0_i32_1 = arith.constant 0 : i32
    return %c0_i32, %c0_i32_0 : i32, i32
  }
  func.func @transform_11(%arg0: i32) -> (i32, i32) {
    %c0_i32 = arith.constant 0 : i32
    %c0_i32_0 = arith.constant 0 : i32
    %c0_i32_1 = arith.constant 0 : i32
    return %c0_i32, %c0_i32_0 : i32, i32
  }
  func.func @transform_12(%arg0: i32) -> (i32, i32) {
    %c0_i32 = arith.constant 0 : i32
    %c0_i32_0 = arith.constant 0 : i32
    %c0_i32_1 = arith.constant 0 : i32
    return %c0_i32, %c0_i32_0 : i32, i32
  }
  func.func @transform_13(%arg0: i32) -> (i32, i32) {
    %c0_i32 = arith.constant 0 : i32
    %c0_i32_0 = arith.constant 0 : i32
    %c0_i32_1 = arith.constant 0 : i32
    return %c0_i32, %c0_i32_0 : i32, i32
  }
  func.func @transform_14(%arg0: i32) -> (i32, i32) {
    %c0_i32 = arith.constant 0 : i32
    %c0_i32_0 = arith.constant 0 : i32
    %c0_i32_1 = arith.constant 0 : i32
    return %c0_i32, %c0_i32_0 : i32, i32
  }
  func.func @transform_15(%arg0: i32) -> (i32, i32) {
    %c0_i32 = arith.constant 0 : i32
    %c0_i32_0 = arith.constant 0 : i32
    %c0_i32_1 = arith.constant 0 : i32
    return %c0_i32, %c0_i32_0 : i32, i32
  }
  func.func @transform_16(%arg0: i32) -> (i32, i32, i32) {
    %c0_i32 = arith.constant 0 : i32
    %c0_i32_0 = arith.constant 0 : i32
    %c0_i32_1 = arith.constant 0 : i32
    return %arg0, %c0_i32, %c0_i32_0 : i32, i32, i32
  }
}

</mosaic_0001>

<llo_original>
// kernel: tpu_custom_call.1
$region0: #{tpu_custom_call.1}
  #allocation0 [shape = 'u32[]', space=smem, size = 0x4, offset = 0x4, fixed_abs, tag = 'smem constant byte address 0x4 - core index']
  #allocation1 [shape = 'u32[72,128]{1,0:T(1,128)}', space=vmem, size = 0x9000, scoped, tag = 'internal scratch']
  %s0 = inlined_call_operand.vmem [shape: f32[1,64,32], index: 0, kind: input, shape index: {}]
  %s1 = inlined_call_operand.vmem [shape: f32[8,32], index: 1, kind: input, shape index: {}]
  %s2 = inlined_call_operand.hbm [shape: f32[8,32], index: 2, kind: input, shape index: {}]
  %s3 = inlined_call_operand.vmem [shape: f32[32,128], index: 3, kind: input, shape index: {}]
  %s4 = inlined_call_operand.vmem [shape: f32[32,128], index: 4, kind: input, shape index: {}]
  %s5 = inlined_call_operand.vmem [shape: f32[1,128], index: 5, kind: input, shape index: {}]
  %s6 = inlined_call_operand.vmem [shape: s32[1,8,1], index: 6, kind: input, shape index: {}]
  %s7 = inlined_call_operand.vmem [shape: s32[1,4,1], index: 7, kind: input, shape index: {}]
  %s8 = inlined_call_operand.vmem [shape: f32[32,64], index: 8, kind: input, shape index: {}]
  %s9 = inlined_call_operand.vmem [shape: f32[32,64], index: 9, kind: input, shape index: {}]
  %s10 = inlined_call_operand.vmem [shape: f32[32,64], index: 10, kind: input, shape index: {}]
  %s11 = inlined_call_operand.vmem [shape: f32[1,64], index: 11, kind: input, shape index: {}]
  %s12 = inlined_call_operand.vmem [shape: f32[64,32], index: 12, kind: input, shape index: {}]
  %s13 = inlined_call_operand.vmem [shape: f32[1,32], index: 13, kind: input, shape index: {}]
  %s14 = inlined_call_operand.hbm [shape: f32[32,128], index: 14, kind: input, shape index: {}]
  %s15 = inlined_call_operand.vmem [shape: f32[1,128], index: 15, kind: input, shape index: {}]
  %s16 = inlined_call_operand.hbm [shape: f32[1,4,128], index: 16, kind: output, shape index: {}]
  %s17 = sld [smem:[#allocation0]]
  $region82: #{tpu_custom_call.1} parent=0
    _
  %s19 = ssub.s32 1, %s17
  %s20 = scalar_select 0, %s19, %s17
  $region1: #{tpu_custom_call.1} parent=0
    #allocation2 [shape = 'u8[4096]{0}', space=vmem, size = 0x1000, scoped, tag = 'input window, operand 2, single buffered']
    #allocation3 [shape = 's32[1]{0}', space=sflag, size = 0x4, scoped, tag = 'scoped memory for tpu_custom_call.1']
    #allocation4 [shape = 's32[1]{0}', space=sflag, size = 0x4, scoped, tag = 'scoped memory for tpu_custom_call.1']
    #allocation5 [shape = 'u8[16384]{0}', space=vmem, size = 0x4000, scoped, tag = 'input window, operand 14, single buffered']
    #allocation6 [shape = 's32[1]{0}', space=sflag, size = 0x4, scoped, tag = 'scoped memory for tpu_custom_call.1']
    #allocation7 [shape = 'u8[2048]{0}', space=vmem, size = 0x800, scoped, tag = 'output window, operand 0, single buffered']
    %21 = vsyncpa [#allocation3], 0
    %22 = vsyncpa [#allocation6], 0
    %23 = vsyncpa [#allocation4], 0
    // Predicated region
    $region2: #{tpu_custom_call.1} parent=1 // pred_check
      _
    $region3: #{tpu_custom_call.1} parent=1 // pred_check_branch
      %25 = sbr.rel (0) target = $region5
    $region4: #{tpu_custom_call.1} parent=1 // pred_region
      _
    $region5: #{tpu_custom_call.1} parent=1 // pred_fallthru
      _
    // Predicated region
    $region6: #{tpu_custom_call.1} parent=1 // pred_check
      _
    $region7: #{tpu_custom_call.1} parent=1 // pred_check_branch
      %27 = sbr.rel (0) target = $region9
    $region8: #{tpu_custom_call.1} parent=1 // pred_region
      _
    $region9: #{tpu_custom_call.1} parent=1 // pred_fallthru
      _
    // Predicated region
    $region10: #{tpu_custom_call.1} parent=1 // pred_check
      _
    $region11: #{tpu_custom_call.1} parent=1 // pred_check_branch
      %29 = sbr.rel (0) target = $region13
    $region12: #{tpu_custom_call.1} parent=1 // pred_region
      %31 = vsyncadd [#allocation3], 0
      %s33 = sshll.u32 %s2, 4
      %s34 = int_to_ptr.hbm [resolvable:$true] %s33
      %s35 = sshll.u32 [#allocation2], 4
      %s36 = int_to_ptr.vmem [resolvable:$true] %s35
      %38 = dma.hbm_to_vmem [thread:$0]  %s34, 128, %s36, [#allocation3]
    $region13: #{tpu_custom_call.1} parent=1 // pred_fallthru
      _
    // Predicated region
    $region14: #{tpu_custom_call.1} parent=1 // pred_check
      _
    $region15: #{tpu_custom_call.1} parent=1 // pred_check_branch
      %40 = sbr.rel (0) target = $region17
    $region16: #{tpu_custom_call.1} parent=1 // pred_region
      _
    $region17: #{tpu_custom_call.1} parent=1 // pred_fallthru
      _
    // Predicated region
    $region18: #{tpu_custom_call.1} parent=1 // pred_check
      _
    $region19: #{tpu_custom_call.1} parent=1 // pred_check_branch
      %42 = sbr.rel (0) target = $region21
    $region20: #{tpu_custom_call.1} parent=1 // pred_region
      _
    $region21: #{tpu_custom_call.1} parent=1 // pred_fallthru
      _
    // Predicated region
    $region22: #{tpu_custom_call.1} parent=1 // pred_check
      _
    $region23: #{tpu_custom_call.1} parent=1 // pred_check_branch
      %44 = sbr.rel (0) target = $region25
    $region24: #{tpu_custom_call.1} parent=1 // pred_region
      _
    $region25: #{tpu_custom_call.1} parent=1 // pred_fallthru
      _
    // Predicated region
    $region26: #{tpu_custom_call.1} parent=1 // pred_check
      _
    $region27: #{tpu_custom_call.1} parent=1 // pred_check_branch
      %46 = sbr.rel (0) target = $region29
    $region28: #{tpu_custom_call.1} parent=1 // pred_region
      _
    $region29: #{tpu_custom_call.1} parent=1 // pred_fallthru
      _
    // Predicated region
    $region30: #{tpu_custom_call.1} parent=1 // pred_check
      _
    $region31: #{tpu_custom_call.1} parent=1 // pred_check_branch
      %48 = sbr.rel (0) target = $region33
    $region32: #{tpu_custom_call.1} parent=1 // pred_region
      _
    $region33: #{tpu_custom_call.1} parent=1 // pred_fallthru
      _
    // Predicated region
    $region34: #{tpu_custom_call.1} parent=1 // pred_check
      _
    $region35: #{tpu_custom_call.1} parent=1 // pred_check_branch
      %50 = sbr.rel (0) target = $region37
    $region36: #{tpu_custom_call.1} parent=1 // pred_region
      _
    $region37: #{tpu_custom_call.1} parent=1 // pred_fallthru
      _
    // Predicated region
    $region38: #{tpu_custom_call.1} parent=1 // pred_check
      _
    $region39: #{tpu_custom_call.1} parent=1 // pred_check_branch
      %52 = sbr.rel (0) target = $region41
    $region40: #{tpu_custom_call.1} parent=1 // pred_region
      _
    $region41: #{tpu_custom_call.1} parent=1 // pred_fallthru
      _
    // Predicated region
    $region42: #{tpu_custom_call.1} parent=1 // pred_check
      _
    $region43: #{tpu_custom_call.1} parent=1 // pred_check_branch
      %54 = sbr.rel (0) target = $region45
    $region44: #{tpu_custom_call.1} parent=1 // pred_region
      _
    $region45: #{tpu_custom_call.1} parent=1 // pred_fallthru
      _
    // Predicated region
    $region46: #{tpu_custom_call.1} parent=1 // pred_check
      _
    $region47: #{tpu_custom_call.1} parent=1 // pred_check_branch
      %56 = sbr.rel (0) target = $region49
    $region48: #{tpu_custom_call.1} parent=1 // pred_region
      _
    $region49: #{tpu_custom_call.1} parent=1 // pred_fallthru
      _
    // Predicated region
    $region50: #{tpu_custom_call.1} parent=1 // pred_check
      _
    $region51: #{tpu_custom_call.1} parent=1 // pred_check_branch
      %58 = sbr.rel (0) target = $region53
    $region52: #{tpu_custom_call.1} parent=1 // pred_region
      _
    $region53: #{tpu_custom_call.1} parent=1 // pred_fallthru
      _
    // Predicated region
    $region54: #{tpu_custom_call.1} parent=1 // pred_check
      _
    $region55: #{tpu_custom_call.1} parent=1 // pred_check_branch
      %60 = sbr.rel (0) target = $region57
    $region56: #{tpu_custom_call.1} parent=1 // pred_region
      _
    $region57: #{tpu_custom_call.1} parent=1 // pred_fallthru
      _
    // Predicated region
    $region58: #{tpu_custom_call.1} parent=1 // pred_check
      _
    $region59: #{tpu_custom_call.1} parent=1 // pred_check_branch
      %62 = sbr.rel (0) target = $region61
    $region60: #{tpu_custom_call.1} parent=1 // pred_region
      %64 = vsyncadd [#allocation6], 0
      %s65 = sshll.u32 %s14, 4
      %s66 = int_to_ptr.hbm [resolvable:$true] %s65
      %s67 = sshll.u32 [#allocation5], 4
      %s68 = int_to_ptr.vmem [resolvable:$true] %s67
      %73 = dma.hbm_to_vmem [thread:$0]  %s66, 512, %s68, [#allocation6], 128, 128, 8
    $region61: #{tpu_custom_call.1} parent=1 // pred_fallthru
      _
    // Predicated region
    $region62: #{tpu_custom_call.1} parent=1 // pred_check
      _
    $region63: #{tpu_custom_call.1} parent=1 // pred_check_branch
      %75 = sbr.rel (0) target = $region65
    $region64: #{tpu_custom_call.1} parent=1 // pred_region
      _
    $region65: #{tpu_custom_call.1} parent=1 // pred_fallthru
      _
    // Predicated region
    $region66: #{tpu_custom_call.1} parent=1 // pred_check
      _
    $region67: #{tpu_custom_call.1} parent=1 // pred_check_branch
      %77 = sbr.rel (0) target = $region69
    $region68: #{tpu_custom_call.1} parent=1 // pred_region
      %79 = dma.done [#allocation3], 128
    $region69: #{tpu_custom_call.1} parent=1 // pred_fallthru
      _
    // Predicated region
    $region70: #{tpu_custom_call.1} parent=1 // pred_check
      _
    $region71: #{tpu_custom_call.1} parent=1 // pred_check_branch
      %81 = sbr.rel (0) target = $region73
    $region72: #{tpu_custom_call.1} parent=1 // pred_region
      %83 = dma.done [#allocation6], 512
    $region73: #{tpu_custom_call.1} parent=1 // pred_fallthru
      _
    %v84 = vld [vmem:[%s0] sm:$0xff]
    %v85 = vld [vmem:[%s0 + $0x8] sm:$0xff]
    %v86 = vld [vmem:[%s0 + $0x10] sm:$0xff]
    %v87 = vld [vmem:[%s0 + $0x18] sm:$0xff]
    %v88 = vld [vmem:[%s0 + $0x20] sm:$0xff]
    %v89 = vld [vmem:[%s0 + $0x28] sm:$0xff]
    %v90 = vld [vmem:[%s0 + $0x30] sm:$0xff]
    %v91 = vld [vmem:[%s0 + $0x38] sm:$0xff]
    %v92 = vld [vmem:[%s3] sm:$0xff]
    %v93 = vld [vmem:[%s3 + $0x8] sm:$0xff]
    %v94 = vld [vmem:[%s3 + $0x10] sm:$0xff]
    %v95 = vld [vmem:[%s3 + $0x18] sm:$0xff]
    %v96 = vld [vmem:[%s5] sm:$0x1]
    %v98 = vperm.slane %v96, 0
    %vm100 = vcmask 261120
    %v102 = vsel %vm100, %v84, 0
    %v105 = vsel %vm100, %v85, 0
    %v108 = vsel %vm100, %v86, 0
    %v111 = vsel %vm100, %v87, 0
    %v114 = vsel %vm100, %v88, 0
    %v117 = vsel %vm100, %v89, 0
    %v120 = vsel %vm100, %v90, 0
    %v123 = vsel %vm100, %v91, 0
    %125 = vmatpush.msra.mxu0 0.0
    %126 = vmatpush.msra.mxu0 0.0
    %127 = vmatpush.msra.mxu0 0.0
    %128 = vmatpush.msra.mxu0 0.0
    %129 = vmatpush.msra.mxu0 0.0
    %130 = vmatpush.msra.mxu0 0.0
    %131 = vmatpush.msra.mxu0 0.0
    %132 = vmatpush.msra.mxu0 0.0
    %133 = vmatpush.msra.mxu0 0.0
    %134 = vmatpush.msra.mxu0 0.0
    %135 = vmatpush.msra.mxu0 0.0
    %136 = vmatpush.msra.mxu0 0.0
    %137 = vmatpush.msra.mxu0 %v95
    %138 = vmatpush.msra.mxu0 %v94
    %139 = vmatpush.msra.mxu0 %v93
    %140 = vmatpush.msra.mxu0 %v92
    %141 = vmatmul.f32.gmra.mxu0 %v102
    %v142 = vpop.f32.mrf.mxu0
    %v143 = vadd.f32 %v98, %v142
    %144 = vmatmul.f32.gmra.mxu0 %v105
    %v145 = vpop.f32.mrf.mxu0
    %v146 = vadd.f32 %v98, %v145
    %147 = vmatmul.f32.gmra.mxu0 %v108
    %v148 = vpop.f32.mrf.mxu0
    %v149 = vadd.f32 %v98, %v148
    %150 = vmatmul.f32.gmra.mxu0 %v111
    %v151 = vpop.f32.mrf.mxu0
    %v152 = vadd.f32 %v98, %v151
    %153 = vmatmul.f32.gmra.mxu0 %v114
    %v154 = vpop.f32.mrf.mxu0
    %v155 = vadd.f32 %v98, %v154
    %156 = vmatmul.f32.gmra.mxu0 %v117
    %v157 = vpop.f32.mrf.mxu0
    %v158 = vadd.f32 %v98, %v157
    %159 = vmatmul.f32.gmra.mxu0 %v120
    %v160 = vpop.f32.mrf.mxu0
    %v161 = vadd.f32 %v98, %v160
    %162 = vmatmul.f32.gmra.mxu0 %v123
    %v163 = vpop.f32.mrf.mxu0
    %v164 = vadd.f32 %v98, %v163
    %165 = vdwg.mxu0
    %v166 = vld [vmem:[%s4] sm:$0xff]
    %v167 = vld [vmem:[%s4 + $0x8] sm:$0xff]
    %v168 = vld [vmem:[%s4 + $0x10] sm:$0xff]
    %v169 = vld [vmem:[%s4 + $0x18] sm:$0xff]
    %v170 = vld [vmem:[%s1] sm:$0xff]
    %v171 = vld [vmem:[#allocation2] sm:$0xff]
    %v173 = vsel %vm100, %v170, 0
    %175 = vmatpush.msra.mxu0 0.0
    %176 = vmatpush.msra.mxu0 0.0
    %177 = vmatpush.msra.mxu0 0.0
    %178 = vmatpush.msra.mxu0 0.0
    %179 = vmatpush.msra.mxu0 0.0
    %180 = vmatpush.msra.mxu0 0.0
    %181 = vmatpush.msra.mxu0 0.0
    %182 = vmatpush.msra.mxu0 0.0
    %183 = vmatpush.msra.mxu0 0.0
    %184 = vmatpush.msra.mxu0 0.0
    %185 = vmatpush.msra.mxu0 0.0
    %186 = vmatpush.msra.mxu0 0.0
    %187 = vmatpush.msra.mxu0 %v169
    %188 = vmatpush.msra.mxu0 %v168
    %189 = vmatpush.msra.mxu0 %v167
    %190 = vmatpush.msra.mxu0 %v166
    %191 = vmatmul.f32.gmra.mxu0 %v173
    %v192 = vpop.f32.mrf.mxu0
    %v193 = vadd.f32 0.0, %v192
    %194 = vdwg.mxu0
    %v195 = vadd.f32 %v143, %v193
    %v196 = vxor.u32 %v195, 2147483648
    %v197 = vmul.f32 %v196, 1.442695
    %v198 = vpow.pop %v197
    %v199 = vadd.f32 %v198, 1.0
    %v200 = vrcp.pop %v199
    %v201 = vmul.f32 %v199, %v200
    %v202 = vsub.f32 1.0, %v201
    %v203 = vmul.f32 %v200, %v202
    %v204 = vadd.f32 %v200, %v203
    %vm205 = vweird.f32 %v199
    %vm206 = vweird.f32 %v200
    %vm207 = vmor %vm205, %vm206
    %v208 = vsel %vm207, %v200, %v204
    %v209 = vand.u32 2147483647, %v199
    %vm210 = vcmp.eq.f32.partialorder %v209, 8.507059e+37
    %v211 = vand.u32 %v199, 2147483648
    %v212 = vor.u32 1.1754944e-38, %v211
    %v213 = vsel %vm210, %v212, %v208
    %v214 = vmul.f32 1.0, %v213
    %v215 = vmul.f32 %v214, 2.0
    %v216 = vsub.f32 %v215, 1.0
    %218 = vrot.lane.b32.xlu0 %v171, 32
    %v219 = vpop.permute.xlu0 %218
    %v221 = vmul.f32 %v214, %v219
    %223 = vrot.lane.b32.xlu0 %v216, 64
    %v224 = vpop.permute.xlu0 %223
    %v226 = vmul.f32 %v214, %v224
    %228 = vrot.lane.b32.xlu0 %v226, 32
    %v229 = vpop.permute.xlu0 %228
    %v231 = vadd.f32 %v221, %v229
    %v232 = vtanh.pop %v231
    %234 = vrot.lane.b32.xlu0 %v232, 64
    %v235 = vpop.permute.xlu0 %234
    %v237 = vmul.f32 %v214, %v235
    %239 = vrot.lane.b32.xlu0 %v237, 32
    %v240 = vpop.permute.xlu0 %239
    %v241 = vsel %vm100, %v240, 0
    %243 = vmatpush.msra.mxu0 0.0
    %244 = vmatpush.msra.mxu0 0.0
    %245 = vmatpush.msra.mxu0 0.0
    %246 = vmatpush.msra.mxu0 0.0
    %247 = vmatpush.msra.mxu0 0.0
    %248 = vmatpush.msra.mxu0 0.0
    %249 = vmatpush.msra.mxu0 0.0
    %250 = vmatpush.msra.mxu0 0.0
    %251 = vmatpush.msra.mxu0 0.0
    %252 = vmatpush.msra.mxu0 0.0
    %253 = vmatpush.msra.mxu0 0.0
    %254 = vmatpush.msra.mxu0 0.0
    %255 = vmatpush.msra.mxu0 %v169
    %256 = vmatpush.msra.mxu0 %v168
    %257 = vmatpush.msra.mxu0 %v167
    %258 = vmatpush.msra.mxu0 %v166
    %259 = vmatmul.f32.gmra.mxu0 %v241
    %v260 = vpop.f32.mrf.mxu0
    %v261 = vadd.f32 0.0, %v260
    %262 = vdwg.mxu0
    %v263 = vadd.f32 %v146, %v261
    %v264 = vxor.u32 %v263, 2147483648
    %v265 = vmul.f32 %v264, 1.442695
    %v266 = vpow.pop %v265
    %v267 = vadd.f32 %v266, 1.0
    %v268 = vrcp.pop %v267
    %v269 = vmul.f32 %v267, %v268
    %v270 = vsub.f32 1.0, %v269
    %v271 = vmul.f32 %v268, %v270
    %v272 = vadd.f32 %v268, %v271
    %vm273 = vweird.f32 %v267
    %vm274 = vweird.f32 %v268
    %vm275 = vmor %vm273, %vm274
    %v276 = vsel %vm275, %v268, %v272
    %v277 = vand.u32 2147483647, %v267
    %vm278 = vcmp.eq.f32.partialorder %v277, 8.507059e+37
    %v279 = vand.u32 %v267, 2147483648
    %v280 = vor.u32 1.1754944e-38, %v279
    %v281 = vsel %vm278, %v280, %v276
    %v282 = vmul.f32 1.0, %v281
    %v283 = vmul.f32 %v282, 2.0
    %v284 = vsub.f32 %v283, 1.0
    %v285 = vmul.f32 %v282, %v231
    %287 = vrot.lane.b32.xlu0 %v284, 64
    %v288 = vpop.permute.xlu0 %287
    %v290 = vmul.f32 %v282, %v288
    %292 = vrot.lane.b32.xlu0 %v290, 32
    %v293 = vpop.permute.xlu0 %292
    %v295 = vadd.f32 %v285, %v293
    %v296 = vtanh.pop %v295
    %298 = vrot.lane.b32.xlu0 %v296, 64
    %v299 = vpop.permute.xlu0 %298
    %v301 = vmul.f32 %v282, %v299
    %v302 = vmax.f32 %v237, %v301
    %304 = vrot.lane.b32.xlu0 %v301, 32
    %v305 = vpop.permute.xlu0 %304
    %v306 = vsel %vm100, %v305, 0
    %308 = vmatpush.msra.mxu0 0.0
    %309 = vmatpush.msra.mxu0 0.0
    %310 = vmatpush.msra.mxu0 0.0
    %311 = vmatpush.msra.mxu0 0.0
    %312 = vmatpush.msra.mxu0 0.0
    %313 = vmatpush.msra.mxu0 0.0
    %314 = vmatpush.msra.mxu0 0.0
    %315 = vmatpush.msra.mxu0 0.0
    %316 = vmatpush.msra.mxu0 0.0
    %317 = vmatpush.msra.mxu0 0.0
    %318 = vmatpush.msra.mxu0 0.0
    %319 = vmatpush.msra.mxu0 0.0
    %320 = vmatpush.msra.mxu0 %v169
    %321 = vmatpush.msra.mxu0 %v168
    %322 = vmatpush.msra.mxu0 %v167
    %323 = vmatpush.msra.mxu0 %v166
    %324 = vmatmul.f32.gmra.mxu0 %v306
    %v325 = vpop.f32.mrf.mxu0
    %v326 = vadd.f32 0.0, %v325
    %327 = vdwg.mxu0
    %v328 = vadd.f32 %v149, %v326
    %v329 = vxor.u32 %v328, 2147483648
    %v330 = vmul.f32 %v329, 1.442695
    %v331 = vpow.pop %v330
    %v332 = vadd.f32 %v331, 1.0
    %v333 = vrcp.pop %v332
    %v334 = vmul.f32 %v332, %v333
    %v335 = vsub.f32 1.0, %v334
    %v336 = vmul.f32 %v333, %v335
    %v337 = vadd.f32 %v333, %v336
    %vm338 = vweird.f32 %v332
    %vm339 = vweird.f32 %v333
    %vm340 = vmor %vm338, %vm339
    %v341 = vsel %vm340, %v333, %v337
    %v342 = vand.u32 2147483647, %v332
    %vm343 = vcmp.eq.f32.partialorder %v342, 8.507059e+37
    %v344 = vand.u32 %v332, 2147483648
    %v345 = vor.u32 1.1754944e-38, %v344
    %v346 = vsel %vm343, %v345, %v341
    %v347 = vmul.f32 1.0, %v346
    %v348 = vmul.f32 %v347, 2.0
    %v349 = vsub.f32 %v348, 1.0
    %v350 = vmul.f32 %v347, %v295
    %352 = vrot.lane.b32.xlu0 %v349, 64
    %v353 = vpop.permute.xlu0 %352
    %v355 = vmul.f32 %v347, %v353
    %357 = vrot.lane.b32.xlu0 %v355, 32
    %v358 = vpop.permute.xlu0 %357
    %v360 = vadd.f32 %v350, %v358
    %v361 = vtanh.pop %v360
    %363 = vrot.lane.b32.xlu0 %v361, 64
    %v364 = vpop.permute.xlu0 %363
    %v366 = vmul.f32 %v347, %v364
    %v367 = vmax.f32 %v302, %v366
    %369 = vrot.lane.b32.xlu0 %v366, 32
    %v370 = vpop.permute.xlu0 %369
    %v371 = vsel %vm100, %v370, 0
    %373 = vmatpush.msra.mxu0 0.0
    %374 = vmatpush.msra.mxu0 0.0
    %375 = vmatpush.msra.mxu0 0.0
    %376 = vmatpush.msra.mxu0 0.0
    %377 = vmatpush.msra.mxu0 0.0
    %378 = vmatpush.msra.mxu0 0.0
    %379 = vmatpush.msra.mxu0 0.0
    %380 = vmatpush.msra.mxu0 0.0
    %381 = vmatpush.msra.mxu0 0.0
    %382 = vmatpush.msra.mxu0 0.0
    %383 = vmatpush.msra.mxu0 0.0
    %384 = vmatpush.msra.mxu0 0.0
    %385 = vmatpush.msra.mxu0 %v169
    %386 = vmatpush.msra.mxu0 %v168
    %387 = vmatpush.msra.mxu0 %v167
    %388 = vmatpush.msra.mxu0 %v166
    %389 = vmatmul.f32.gmra.mxu0 %v371
    %v390 = vpop.f32.mrf.mxu0
    %v391 = vadd.f32 0.0, %v390
    %392 = vdwg.mxu0
    %v393 = vadd.f32 %v152, %v391
    %v394 = vxor.u32 %v393, 2147483648
    %v395 = vmul.f32 %v394, 1.442695
    %v396 = vpow.pop %v395
    %v397 = vadd.f32 %v396, 1.0
    %v398 = vrcp.pop %v397
    %v399 = vmul.f32 %v397, %v398
    %v400 = vsub.f32 1.0, %v399
    %v401 = vmul.f32 %v398, %v400
    %v402 = vadd.f32 %v398, %v401
    %vm403 = vweird.f32 %v397
    %vm404 = vweird.f32 %v398
    %vm405 = vmor %vm403, %vm404
    %v406 = vsel %vm405, %v398, %v402
    %v407 = vand.u32 2147483647, %v397
    %vm408 = vcmp.eq.f32.partialorder %v407, 8.507059e+37
    %v409 = vand.u32 %v397, 2147483648
    %v410 = vor.u32 1.1754944e-38, %v409
    %v411 = vsel %vm408, %v410, %v406
    %v412 = vmul.f32 1.0, %v411
    %v413 = vmul.f32 %v412, 2.0
    %v414 = vsub.f32 %v413, 1.0
    %v415 = vmul.f32 %v412, %v360
    %417 = vrot.lane.b32.xlu0 %v414, 64
    %v418 = vpop.permute.xlu0 %417
    %v420 = vmul.f32 %v412, %v418
    %422 = vrot.lane.b32.xlu0 %v420, 32
    %v423 = vpop.permute.xlu0 %422
    %v425 = vadd.f32 %v415, %v423
    %v426 = vtanh.pop %v425
    %428 = vrot.lane.b32.xlu0 %v426, 64
    %v429 = vpop.permute.xlu0 %428
    %v431 = vmul.f32 %v412, %v429
    %v432 = vmax.f32 %v367, %v431
    %434 = vrot.lane.b32.xlu0 %v431, 32
    %v435 = vpop.permute.xlu0 %434
    %v436 = vsel %vm100, %v435, 0
    %438 = vmatpush.msra.mxu0 0.0
    %439 = vmatpush.msra.mxu0 0.0
    %440 = vmatpush.msra.mxu0 0.0
    %441 = vmatpush.msra.mxu0 0.0
    %442 = vmatpush.msra.mxu0 0.0
    %443 = vmatpush.msra.mxu0 0.0
    %444 = vmatpush.msra.mxu0 0.0
    %445 = vmatpush.msra.mxu0 0.0
    %446 = vmatpush.msra.mxu0 0.0
    %447 = vmatpush.msra.mxu0 0.0
    %448 = vmatpush.msra.mxu0 0.0
    %449 = vmatpush.msra.mxu0 0.0
    %450 = vmatpush.msra.mxu0 %v169
    %451 = vmatpush.msra.mxu0 %v168
    %452 = vmatpush.msra.mxu0 %v167
    %453 = vmatpush.msra.mxu0 %v166
    %454 = vmatmul.f32.gmra.mxu0 %v436
    %v455 = vpop.f32.mrf.mxu0
    %v456 = vadd.f32 0.0, %v455
    %457 = vdwg.mxu0
    %v458 = vadd.f32 %v155, %v456
    %v459 = vxor.u32 %v458, 2147483648
    %v460 = vmul.f32 %v459, 1.442695
    %v461 = vpow.pop %v460
    %v462 = vadd.f32 %v461, 1.0
    %v463 = vrcp.pop %v462
    %v464 = vmul.f32 %v462, %v463
    %v465 = vsub.f32 1.0, %v464
    %v466 = vmul.f32 %v463, %v465
    %v467 = vadd.f32 %v463, %v466
    %vm468 = vweird.f32 %v462
    %vm469 = vweird.f32 %v463
    %vm470 = vmor %vm468, %vm469
    %v471 = vsel %vm470, %v463, %v467
    %v472 = vand.u32 2147483647, %v462
    %vm473 = vcmp.eq.f32.partialorder %v472, 8.507059e+37
    %v474 = vand.u32 %v462, 2147483648
    %v475 = vor.u32 1.1754944e-38, %v474
    %v476 = vsel %vm473, %v475, %v471
    %v477 = vmul.f32 1.0, %v476
    %v478 = vmul.f32 %v477, 2.0
    %v479 = vsub.f32 %v478, 1.0
    %v480 = vmul.f32 %v477, %v425
    %482 = vrot.lane.b32.xlu0 %v479, 64
    %v483 = vpop.permute.xlu0 %482
    %v485 = vmul.f32 %v477, %v483
    %487 = vrot.lane.b32.xlu0 %v485, 32
    %v488 = vpop.permute.xlu0 %487
    %v490 = vadd.f32 %v480, %v488
    %v491 = vtanh.pop %v490
    %493 = vrot.lane.b32.xlu0 %v491, 64
    %v494 = vpop.permute.xlu0 %493
    %v496 = vmul.f32 %v477, %v494
    %v497 = vmax.f32 %v432, %v496
    %499 = vrot.lane.b32.xlu0 %v496, 32
    %v500 = vpop.permute.xlu0 %499
    %v501 = vsel %vm100, %v500, 0
    %503 = vmatpush.msra.mxu0 0.0
    %504 = vmatpush.msra.mxu0 0.0
    %505 = vmatpush.msra.mxu0 0.0
    %506 = vmatpush.msra.mxu0 0.0
    %507 = vmatpush.msra.mxu0 0.0
    %508 = vmatpush.msra.mxu0 0.0
    %509 = vmatpush.msra.mxu0 0.0
    %510 = vmatpush.msra.mxu0 0.0
    %511 = vmatpush.msra.mxu0 0.0
    %512 = vmatpush.msra.mxu0 0.0
    %513 = vmatpush.msra.mxu0 0.0
    %514 = vmatpush.msra.mxu0 0.0
    %515 = vmatpush.msra.mxu0 %v169
    %516 = vmatpush.msra.mxu0 %v168
    %517 = vmatpush.msra.mxu0 %v167
    %518 = vmatpush.msra.mxu0 %v166
    %519 = vmatmul.f32.gmra.mxu0 %v501
    %v520 = vpop.f32.mrf.mxu0
    %v521 = vadd.f32 0.0, %v520
    %522 = vdwg.mxu0
    %v523 = vadd.f32 %v158, %v521
    %v524 = vxor.u32 %v523, 2147483648
    %v525 = vmul.f32 %v524, 1.442695
    %v526 = vpow.pop %v525
    %v527 = vadd.f32 %v526, 1.0
    %v528 = vrcp.pop %v527
    %v529 = vmul.f32 %v527, %v528
    %v530 = vsub.f32 1.0, %v529
    %v531 = vmul.f32 %v528, %v530
    %v532 = vadd.f32 %v528, %v531
    %vm533 = vweird.f32 %v527
    %vm534 = vweird.f32 %v528
    %vm535 = vmor %vm533, %vm534
    %v536 = vsel %vm535, %v528, %v532
    %v537 = vand.u32 2147483647, %v527
    %vm538 = vcmp.eq.f32.partialorder %v537, 8.507059e+37
    %v539 = vand.u32 %v527, 2147483648
    %v540 = vor.u32 1.1754944e-38, %v539
    %v541 = vsel %vm538, %v540, %v536
    %v542 = vmul.f32 1.0, %v541
    %v543 = vmul.f32 %v542, 2.0
    %v544 = vsub.f32 %v543, 1.0
    %v545 = vmul.f32 %v542, %v490
    %547 = vrot.lane.b32.xlu0 %v544, 64
    %v548 = vpop.permute.xlu0 %547
    %v550 = vmul.f32 %v542, %v548
    %552 = vrot.lane.b32.xlu0 %v550, 32
    %v553 = vpop.permute.xlu0 %552
    %v555 = vadd.f32 %v545, %v553
    %v556 = vtanh.pop %v555
    %558 = vrot.lane.b32.xlu0 %v556, 64
    %v559 = vpop.permute.xlu0 %558
    %v561 = vmul.f32 %v542, %v559
    %v562 = vmax.f32 %v497, %v561
    %564 = vrot.lane.b32.xlu0 %v561, 32
    %v565 = vpop.permute.xlu0 %564
    %v566 = vsel %vm100, %v565, 0
    %568 = vmatpush.msra.mxu0 0.0
    %569 = vmatpush.msra.mxu0 0.0
    %570 = vmatpush.msra.mxu0 0.0
    %571 = vmatpush.msra.mxu0 0.0
    %572 = vmatpush.msra.mxu0 0.0
    %573 = vmatpush.msra.mxu0 0.0
    %574 = vmatpush.msra.mxu0 0.0
    %575 = vmatpush.msra.mxu0 0.0
    %576 = vmatpush.msra.mxu0 0.0
    %577 = vmatpush.msra.mxu0 0.0
    %578 = vmatpush.msra.mxu0 0.0
    %579 = vmatpush.msra.mxu0 0.0
    %580 = vmatpush.msra.mxu0 %v169
    %581 = vmatpush.msra.mxu0 %v168
    %582 = vmatpush.msra.mxu0 %v167
    %583 = vmatpush.msra.mxu0 %v166
    %584 = vmatmul.f32.gmra.mxu0 %v566
    %v585 = vpop.f32.mrf.mxu0
    %v586 = vadd.f32 0.0, %v585
    %587 = vdwg.mxu0
    %v588 = vadd.f32 %v161, %v586
    %v589 = vxor.u32 %v588, 2147483648
    %v590 = vmul.f32 %v589, 1.442695
    %v591 = vpow.pop %v590
    %v592 = vadd.f32 %v591, 1.0
    %v593 = vrcp.pop %v592
    %v594 = vmul.f32 %v592, %v593
    %v595 = vsub.f32 1.0, %v594
    %v596 = vmul.f32 %v593, %v595
    %v597 = vadd.f32 %v593, %v596
    %vm598 = vweird.f32 %v592
    %vm599 = vweird.f32 %v593
    %vm600 = vmor %vm598, %vm599
    %v601 = vsel %vm600, %v593, %v597
    %v602 = vand.u32 2147483647, %v592
    %vm603 = vcmp.eq.f32.partialorder %v602, 8.507059e+37
    %v604 = vand.u32 %v592, 2147483648
    %v605 = vor.u32 1.1754944e-38, %v604
    %v606 = vsel %vm603, %v605, %v601
    %v607 = vmul.f32 1.0, %v606
    %v608 = vmul.f32 %v607, 2.0
    %v609 = vsub.f32 %v608, 1.0
    %v610 = vmul.f32 %v607, %v555
    %612 = vrot.lane.b32.xlu0 %v609, 64
    %v613 = vpop.permute.xlu0 %612
    %v615 = vmul.f32 %v607, %v613
    %617 = vrot.lane.b32.xlu0 %v615, 32
    %v618 = vpop.permute.xlu0 %617
    %v620 = vadd.f32 %v610, %v618
    %v621 = vtanh.pop %v620
    %623 = vrot.lane.b32.xlu0 %v621, 64
    %v624 = vpop.permute.xlu0 %623
    %v626 = vmul.f32 %v607, %v624
    %v627 = vmax.f32 %v562, %v626
    %629 = vrot.lane.b32.xlu0 %v626, 32
    %v630 = vpop.permute.xlu0 %629
    %v631 = vsel %vm100, %v630, 0
    %633 = vmatpush.msra.mxu0 0.0
    %634 = vmatpush.msra.mxu0 0.0
    %635 = vmatpush.msra.mxu0 0.0
    %636 = vmatpush.msra.mxu0 0.0
    %637 = vmatpush.msra.mxu0 0.0
    %638 = vmatpush.msra.mxu0 0.0
    %639 = vmatpush.msra.mxu0 0.0
    %640 = vmatpush.msra.mxu0 0.0
    %641 = vmatpush.msra.mxu0 0.0
    %642 = vmatpush.msra.mxu0 0.0
    %643 = vmatpush.msra.mxu0 0.0
    %644 = vmatpush.msra.mxu0 0.0
    %645 = vmatpush.msra.mxu0 %v169
    %646 = vmatpush.msra.mxu0 %v168
    %647 = vmatpush.msra.mxu0 %v167
    %648 = vmatpush.msra.mxu0 %v166
    %649 = vmatmul.f32.gmra.mxu0 %v631
    %v650 = vpop.f32.mrf.mxu0
    %v651 = vadd.f32 0.0, %v650
    %652 = vdwg.mxu0
    %v653 = vadd.f32 %v164, %v651
    %v654 = vxor.u32 %v653, 2147483648
    %v655 = vmul.f32 %v654, 1.442695
    %v656 = vpow.pop %v655
    %v657 = vadd.f32 %v656, 1.0
    %v658 = vrcp.pop %v657
    %v659 = vmul.f32 %v657, %v658
    %v660 = vsub.f32 1.0, %v659
    %v661 = vmul.f32 %v658, %v660
    %v662 = vadd.f32 %v658, %v661
    %vm663 = vweird.f32 %v657
    %vm664 = vweird.f32 %v658
    %vm665 = vmor %vm663, %vm664
    %v666 = vsel %vm665, %v658, %v662
    %v667 = vand.u32 2147483647, %v657
    %vm668 = vcmp.eq.f32.partialorder %v667, 8.507059e+37
    %v669 = vand.u32 %v657, 2147483648
    %v670 = vor.u32 1.1754944e-38, %v669
    %v671 = vsel %vm668, %v670, %v666
    %v672 = vmul.f32 1.0, %v671
    %v673 = vmul.f32 %v672, 2.0
    %v674 = vsub.f32 %v673, 1.0
    %v675 = vmul.f32 %v672, %v620
    %677 = vrot.lane.b32.xlu0 %v674, 64
    %v678 = vpop.permute.xlu0 %677
    %v680 = vmul.f32 %v672, %v678
    %682 = vrot.lane.b32.xlu0 %v680, 32
    %v683 = vpop.permute.xlu0 %682
    %v685 = vadd.f32 %v675, %v683
    %v686 = vtanh.pop %v685
    %688 = vrot.lane.b32.xlu0 %v686, 64
    %v689 = vpop.permute.xlu0 %688
    %v691 = vmul.f32 %v672, %v689
    %v692 = vmax.f32 %v627, %v691
    %v693 = vlaneseq
    %v694 = vand.u32 %v693, 127
    %v695 = vld [vmem:[%s6] sm:$0xff]
    %696 = vset.pattern.permute.xlu0 0
    %697 = vperm.xlu0 %696, %v695
    %v698 = vpop.permute.xlu0 %697
    %vm699 = vcmp.eq.s32.totalorder %v698, %v694
    %v700 = vsel %vm699, 1, 0
    %v701 = vcvt.s32.f32 %v700
    %703 = vrot.lane.b32.xlu0 %v692, 32
    %v704 = vpop.permute.xlu0 %703
    %vm705 = vcmask 31744
    %v707 = vsel %vm705, %v701, 0
    %vm709 = vcmask 1043456
    %v710 = vsel %vm709, %v704, 0
    %712 = vmatpush.msra.mxu0 0.0
    %713 = vmatpush.msra.mxu0 0.0
    %714 = vmatpush.msra.mxu0 0.0
    %715 = vmatpush.msra.mxu0 0.0
    %716 = vmatpush.msra.mxu0 0.0
    %717 = vmatpush.msra.mxu0 0.0
    %718 = vmatpush.msra.mxu0 0.0
    %719 = vmatpush.msra.mxu0 0.0
    %720 = vmatpush.msra.mxu0 0.0
    %721 = vmatpush.msra.mxu0 0.0
    %722 = vmatpush.msra.mxu0 0.0
    %723 = vmatpush.msra.mxu0 0.0
    %724 = vmatpush.msra.mxu0 0.0
    %725 = vmatpush.msra.mxu0 0.0
    %726 = vmatpush.msra.mxu0 0.0
    %727 = vmatpush.msra.mxu0 %v710
    %728 = vmatmul.f32.gmra.mxu0 %v707
    %v729 = vpop.f32.mrf.mxu0
    %v730 = vadd.f32 0.0, %v729
    %731 = vdwg.mxu0
    %v732 = vld [vmem:[%s7] sm:$0xf]
    %733 = vset.pattern.permute.xlu0 0
    %734 = vperm.xlu0 %733, %v732
    %v735 = vpop.permute.xlu0 %734
    %vm736 = vcmp.eq.s32.totalorder %v735, %v694
    %v737 = vsel %vm736, 1, 0
    %v738 = vcvt.s32.f32 %v737
    %v739 = vrot.slane %v692, 4
    %740 = vrot.lane.b32.xlu0 %v739, 32
    %v741 = vpop.permute.xlu0 %740
    %v743 = vsel %vm705, %v738, 0
    %v745 = vsel %vm709, %v741, 0
    %747 = vmatpush.msra.mxu0 0.0
    %748 = vmatpush.msra.mxu0 0.0
    %749 = vmatpush.msra.mxu0 0.0
    %750 = vmatpush.msra.mxu0 0.0
    %751 = vmatpush.msra.mxu0 0.0
    %752 = vmatpush.msra.mxu0 0.0
    %753 = vmatpush.msra.mxu0 0.0
    %754 = vmatpush.msra.mxu0 0.0
    %755 = vmatpush.msra.mxu0 0.0
    %756 = vmatpush.msra.mxu0 0.0
    %757 = vmatpush.msra.mxu0 0.0
    %758 = vmatpush.msra.mxu0 0.0
    %759 = vmatpush.msra.mxu0 0.0
    %760 = vmatpush.msra.mxu0 0.0
    %761 = vmatpush.msra.mxu0 0.0
    %762 = vmatpush.msra.mxu0 %v745
    %763 = vmatmul.f32.gmra.mxu0 %v743
    %v764 = vpop.f32.mrf.mxu0
    %v765 = vadd.f32 0.0, %v764
    %766 = vdwg.mxu0
    %v767 = vld [vmem:[%s8] sm:$0xff]
    %v768 = vld [vmem:[%s8 + $0x8] sm:$0xff]
    %v769 = vld [vmem:[%s8 + $0x10] sm:$0xff]
    %v770 = vld [vmem:[%s8 + $0x18] sm:$0xff]
    %v771 = vld [vmem:[%s9] sm:$0xff]
    %v772 = vld [vmem:[%s9 + $0x8] sm:$0xff]
    %v773 = vld [vmem:[%s9 + $0x10] sm:$0xff]
    %v774 = vld [vmem:[%s9 + $0x18] sm:$0xff]
    %v776 = vrot.slane %v730, 4
    %v777 = vsel %vm100, %v776, 0
    %779 = vmatpush.msra.mxu0 0.0
    %780 = vmatpush.msra.mxu0 0.0
    %781 = vmatpush.msra.mxu0 0.0
    %782 = vmatpush.msra.mxu0 0.0
    %783 = vmatpush.msra.mxu0 0.0
    %784 = vmatpush.msra.mxu0 0.0
    %785 = vmatpush.msra.mxu0 0.0
    %786 = vmatpush.msra.mxu0 0.0
    %787 = vmatpush.msra.mxu0 0.0
    %788 = vmatpush.msra.mxu0 0.0
    %789 = vmatpush.msra.mxu0 0.0
    %790 = vmatpush.msra.mxu0 0.0
    %791 = vmatpush.msra.mxu0 %v774
    %792 = vmatpush.msra.mxu0 %v773
    %793 = vmatpush.msra.mxu0 %v772
    %794 = vmatpush.msra.mxu0 %v771
    %795 = vmatmul.f32.gmra.mxu0 %v777
    %v796 = vpop.f32.mrf.mxu0
    %v797 = vadd.f32 0.0, %v796
    %798 = vdwg.mxu0
    %v799 = vsel %vm100, %v730, 0
    %801 = vmatpush.msra.mxu0 0.0
    %802 = vmatpush.msra.mxu0 0.0
    %803 = vmatpush.msra.mxu0 0.0
    %804 = vmatpush.msra.mxu0 0.0
    %805 = vmatpush.msra.mxu0 0.0
    %806 = vmatpush.msra.mxu0 0.0
    %807 = vmatpush.msra.mxu0 0.0
    %808 = vmatpush.msra.mxu0 0.0
    %809 = vmatpush.msra.mxu0 0.0
    %810 = vmatpush.msra.mxu0 0.0
    %811 = vmatpush.msra.mxu0 0.0
    %812 = vmatpush.msra.mxu0 0.0
    %813 = vmatpush.msra.mxu0 %v770
    %814 = vmatpush.msra.mxu0 %v769
    %815 = vmatpush.msra.mxu0 %v768
    %816 = vmatpush.msra.mxu0 %v767
    %817 = vmatmul.f32.gmra.mxu0 %v799
    %v818 = vpop.f32.mrf.mxu0
    %v819 = vadd.f32 %v797, %v818
    %820 = vdwg.mxu0
    %v821 = vld [vmem:[%s10] sm:$0xff]
    %v822 = vld [vmem:[%s10 + $0x8] sm:$0xff]
    %v823 = vld [vmem:[%s10 + $0x10] sm:$0xff]
    %v824 = vld [vmem:[%s10 + $0x18] sm:$0xff]
    %v826 = vsel %vm100, %v765, 0
    %828 = vmatpush.msra.mxu0 0.0
    %829 = vmatpush.msra.mxu0 0.0
    %830 = vmatpush.msra.mxu0 0.0
    %831 = vmatpush.msra.mxu0 0.0
    %832 = vmatpush.msra.mxu0 0.0
    %833 = vmatpush.msra.mxu0 0.0
    %834 = vmatpush.msra.mxu0 0.0
    %835 = vmatpush.msra.mxu0 0.0
    %836 = vmatpush.msra.mxu0 0.0
    %837 = vmatpush.msra.mxu0 0.0
    %838 = vmatpush.msra.mxu0 0.0
    %839 = vmatpush.msra.mxu0 0.0
    %840 = vmatpush.msra.mxu0 %v824
    %841 = vmatpush.msra.mxu0 %v823
    %842 = vmatpush.msra.mxu0 %v822
    %843 = vmatpush.msra.mxu0 %v821
    %844 = vmatmul.f32.gmra.mxu0 %v826
    %v845 = vpop.f32.mrf.mxu0
    %v846 = vadd.f32 0.0, %v845
    %847 = vdwg.mxu0
    %v848 = vadd.f32 %v819, %v846
    %v849 = vld [vmem:[%s11] sm:$0x1]
    %v851 = vperm.slane %v849, 0
    %v853 = vadd.f32 %v848, %v851
    %v854 = vmax.f32 %v853, 0.0
    %v855 = vld [vmem:[%s12] sm:$0xff]
    %v856 = vld [vmem:[%s12 + $0x8] sm:$0xff]
    %v857 = vld [vmem:[%s12 + $0x10] sm:$0xff]
    %v858 = vld [vmem:[%s12 + $0x18] sm:$0xff]
    %v859 = vld [vmem:[%s12 + $0x20] sm:$0xff]
    %v860 = vld [vmem:[%s12 + $0x28] sm:$0xff]
    %v861 = vld [vmem:[%s12 + $0x30] sm:$0xff]
    %v862 = vld [vmem:[%s12 + $0x38] sm:$0xff]
    %v863 = vld [vmem:[%s13] sm:$0x1]
    %v865 = vperm.slane %v863, 0
    %vm867 = vcmask 523264
    %v869 = vsel %vm867, %v854, 0
    %871 = vmatpush.msra.mxu0 0.0
    %872 = vmatpush.msra.mxu0 0.0
    %873 = vmatpush.msra.mxu0 0.0
    %874 = vmatpush.msra.mxu0 0.0
    %875 = vmatpush.msra.mxu0 0.0
    %876 = vmatpush.msra.mxu0 0.0
    %877 = vmatpush.msra.mxu0 0.0
    %878 = vmatpush.msra.mxu0 0.0
    %879 = vmatpush.msra.mxu0 %v862
    %880 = vmatpush.msra.mxu0 %v861
    %881 = vmatpush.msra.mxu0 %v860
    %882 = vmatpush.msra.mxu0 %v859
    %883 = vmatpush.msra.mxu0 %v858
    %884 = vmatpush.msra.mxu0 %v857
    %885 = vmatpush.msra.mxu0 %v856
    %886 = vmatpush.msra.mxu0 %v855
    %887 = vmatmul.f32.gmra.mxu0 %v869
    %v888 = vpop.f32.mrf.mxu0
    %v889 = vadd.f32 %v865, %v888
    %890 = vdwg.mxu0
    %v891 = vmax.f32 %v889, 0.0
    %v892 = vld [vmem:[#allocation5] sm:$0xff]
    %v893 = vld [vmem:[#allocation5 + $0x8] sm:$0xff]
    %v894 = vld [vmem:[#allocation5 + $0x10] sm:$0xff]
    %v895 = vld [vmem:[#allocation5 + $0x18] sm:$0xff]
    %v896 = vld [vmem:[%s15] sm:$0x1]
    %v898 = vperm.slane %v896, 0
    %v901 = vsel %vm100, %v891, 0
    %903 = vmatpush.msra.mxu0 0.0
    %904 = vmatpush.msra.mxu0 0.0
    %905 = vmatpush.msra.mxu0 0.0
    %906 = vmatpush.msra.mxu0 0.0
    %907 = vmatpush.msra.mxu0 0.0
    %908 = vmatpush.msra.mxu0 0.0
    %909 = vmatpush.msra.mxu0 0.0
    %910 = vmatpush.msra.mxu0 0.0
    %911 = vmatpush.msra.mxu0 0.0
    %912 = vmatpush.msra.mxu0 0.0
    %913 = vmatpush.msra.mxu0 0.0
    %914 = vmatpush.msra.mxu0 0.0
    %915 = vmatpush.msra.mxu0 %v895
    %916 = vmatpush.msra.mxu0 %v894
    %917 = vmatpush.msra.mxu0 %v893
    %918 = vmatpush.msra.mxu0 %v892
    %919 = vmatmul.f32.gmra.mxu0 %v901
    %v920 = vpop.f32.mrf.mxu0
    %v921 = vadd.f32 %v898, %v920
    %922 = vdwg.mxu0
    %923 = vst [vmem:[#allocation7] sm:$0xf] %v921
    // Predicated region
    $region74: #{tpu_custom_call.1} parent=1 // pred_check
      _
    $region75: #{tpu_custom_call.1} parent=1 // pred_check_branch
      %925 = sbr.rel (0) target = $region77
    $region76: #{tpu_custom_call.1} parent=1 // pred_region
      %927 = vsyncadd [#allocation4], 0
      %s929 = sshll.u32 [#allocation7], 4
      %s930 = int_to_ptr.vmem [resolvable:$true] %s929
      %s931 = sshll.u32 %s16, 4
      %s932 = int_to_ptr.hbm [resolvable:$true] %s931
      %934 = dma.vmem_to_hbm [thread:$0]  %s930, 64, %s932, [#allocation4]
    $region77: #{tpu_custom_call.1} parent=1 // pred_fallthru
      _
    // Predicated region
    $region78: #{tpu_custom_call.1} parent=1 // pred_check
      _
    $region79: #{tpu_custom_call.1} parent=1 // pred_check_branch
      %936 = sbr.rel (0) target = $region81
    $region80: #{tpu_custom_call.1} parent=1 // pred_region
      %938 = dma.done [#allocation4], 64
    $region81: #{tpu_custom_call.1} parent=1 // pred_fallthru
      _
    %939 = vsyncpa [#allocation3], 1
    %940 = vsyncpa [#allocation6], 1
    %941 = vsyncpa [#allocation4], 1

</llo_original>
